<compile_context>
chip_gen: v5e
topology: v5e:2x2
jax: 0.10.0
libtpu: 0.0.40
codegen_flags: <defaults>
</compile_context>

<pallas_src>
import jax
import jax.numpy as jnp
from jax.experimental import pallas as pl
from jax.experimental.pallas import tpu as pltpu

EPS = 1e-5  # PyTorch BatchNorm default eps


# ----------------------------------------------------------------------------- kernel
def lstm_model_kernel(xb_ref, rssi_ref, rssi_W_ref, rssi_b_ref,
                      lin2_Wa_ref, lin2_Wb_ref, lin2_b_ref,
                      l1_W_ref, l1_b_ref, l2_W_ref, l2_b_ref,
                      head_W_ref, head_b_ref, out_ref):
    f32 = jnp.float32
    bf16 = jnp.bfloat16

    # ---- rssi branch: (BatchNorm1d folded into) Linear(F, F*64)
    x_rssi = (jnp.dot(rssi_ref[...], rssi_W_ref[...], preferred_element_type=f32)
              + rssi_b_ref[...])                                   # [B, F*64] f32

    # ---- concat + BatchNorm1d(2*F*64) + Dropout(id) + Linear(., 256) + ReLU
    # BN folded into the two weight halves; concat folded into two matmuls.
    x = (jnp.dot(xb_ref[...], lin2_Wa_ref[...], preferred_element_type=f32)
         + jnp.dot(x_rssi.astype(bf16), lin2_Wb_ref[...], preferred_element_type=f32)
         + lin2_b_ref[...])
    x = jnp.maximum(x, 0.0)                                        # [B, 256]
    # batch_norm1 (BatchNorm1d(1) scalar affine) is folded into l1_W / l1_b.

    # ---- lstm1 (256 -> 128), single step, h0=c0=0. Gate layout i|g|o, 128 lanes each.
    g1 = (jnp.dot(x.astype(bf16), l1_W_ref[...], preferred_element_type=f32)
          + l1_b_ref[...])                                         # [B, 384]
    i1 = jax.nn.sigmoid(g1[:, 0:128])
    gg1 = jnp.tanh(g1[:, 128:256])
    o1 = jax.nn.sigmoid(g1[:, 256:384])
    h1 = jnp.maximum(o1 * jnp.tanh(i1 * gg1), 0.0)                 # relu, [B, 128]

    # ---- lstm2 (128 -> 16), single step. Gate layout i|g|o, each padded to 128 lanes
    # (valid data in the first 16 lanes of each group; padded lanes compute exactly 0).
    g2 = (jnp.dot(h1, l2_W_ref[...], preferred_element_type=f32)
          + l2_b_ref[...])                                         # [B, 384]
    i2 = jax.nn.sigmoid(g2[:, 0:128])
    gg2 = jnp.tanh(g2[:, 128:256])
    o2 = jax.nn.sigmoid(g2[:, 256:384])
    h2 = jnp.maximum(o2 * jnp.tanh(i2 * gg2), 0.0)                 # relu, [B, 128]

    # ---- fused heads: columns [0:2]=xy, [2]=floor, [3:128]=zero pad. One lane-dense
    # (B, 128) store; ReLU applied only to columns >= 2 (floor + zero pad).
    head = (jnp.dot(h2, head_W_ref[...], preferred_element_type=f32)
            + head_b_ref[...])                                     # [B, 128]
    col = jax.lax.broadcasted_iota(jnp.int32, head.shape, 1)
    out_ref[...] = jnp.where(col >= 2, jnp.maximum(head, 0.0), head)


# --------------------------------------------------------------- one-time param folding
def prepare_params(p):
    """Fold eval-mode BatchNorms into adjacent weights, drop dead f-gate columns,
    lane-pad lstm2 gates, fuse the two heads. Run once at param-load time."""
    def bn_scale_shift(prm):
        g, b, m, v = prm[0], prm[1], prm[2], prm[3]
        s = g / jnp.sqrt(v + EPS)
        return s, b - m * s

    half = p['rssi_W'].shape[1]        # F * 64
    H1, H2 = 128, 16
    kp = {'emb': p['emb'].astype(jnp.float32)}

    # rssi: BatchNorm1d(F) folded into Linear(F, F*64)
    s, t = bn_scale_shift(p['rssi_bn'])
    kp['rssi_W'] = (s[:, None] * p['rssi_W']).astype(jnp.float32)
    kp['rssi_b'] = (p['rssi_b'] + t[None, :] @ p['rssi_W']).astype(jnp.float32)

    # bn over concat folded into the two halves of Linear(2*F*64, 256); store bf16
    s_c, t_c = bn_scale_shift(p['bn_cat'])
    kp['lin2_Wa'] = (s_c[:half, None] * p['lin2_W'][:half, :]).astype(jnp.bfloat16)
    kp['lin2_Wb'] = (s_c[half:, None] * p['lin2_W'][half:, :]).astype(jnp.bfloat16)
    kp['lin2_b'] = (p['lin2_b'] + t_c[None, :] @ p['lin2_W']).astype(jnp.float32)

    # BatchNorm1d(1) scalar affine folded into lstm1 input weights; drop dead f gate.
    g1, b1, m1, v1 = p['bn1c'][0], p['bn1c'][1], p['bn1c'][2], p['bn1c'][3]
    s1 = g1 / jnp.sqrt(v1 + EPS)
    t1 = b1 - m1 * s1
    keep1 = jnp.concatenate([jnp.arange(0, H1), jnp.arange(2 * H1, 4 * H1)])  # i | g | o
    l1_W = p['l1_W'][:, keep1]                                     # (256, 384)
    kp['l1_b'] = (p['l1_b'][:, keep1]
                  + t1 * jnp.sum(l1_W, axis=0, keepdims=True)).astype(jnp.float32)
    kp['l1_W'] = (s1 * l1_W).astype(jnp.bfloat16)

    # lstm2: drop f gate, pad each live 16-wide gate to its own 128-lane group.
    W2, b2 = p['l2_W'], p['l2_b'][0]
    l2_W = jnp.zeros((H1, 3 * 128), jnp.float32)
    l2_b = jnp.zeros((1, 3 * 128), jnp.float32)
    for gi, c0 in enumerate((0, 2 * H2, 3 * H2)):                  # i, g, o
        l2_W = l2_W.at[:, gi * 128:gi * 128 + H2].set(W2[:, c0:c0 + H2])
        l2_b = l2_b.at[0, gi * 128:gi * 128 + H2].set(b2[c0:c0 + H2])
    kp['l2_W'], kp['l2_b'] = l2_W, l2_b

    # fused heads: columns [0:2]=xy, [2]=floor, rest zero; rows 16:128 zero.
    head_W = jnp.zeros((128, 128), jnp.float32)
    head_W = head_W.at[:H2, 0:2].set(p['xy_W'])
    head_W = head_W.at[:H2, 2:3].set(p['fl_W'])
    head_b = jnp.zeros((1, 128), jnp.float32)
    head_b = head_b.at[0, 0:2].set(p['xy_b'][0])
    head_b = head_b.at[0, 2].set(p['fl_b'][0, 0])
    kp['head_W'], kp['head_b'] = head_W, head_b
    return kp


# --------------------------------------------------------------------------- wrapper
def lstm_model_forward(bssid_feats, rssi_feats, kp):
    B, F = bssid_feats.shape
    D = kp['emb'].shape[1]
    half = F * D

    # Embedding lookup with max_norm=True (== 1.0): renorm rows with L2 norm > 1.
    # TODO(synk): the data-dependent row gather stays in XLA (no clean single-DMA
    # Pallas form); everything downstream of it is fused into one kernel.
    emb = jnp.take(kp['emb'], bssid_feats, axis=0)                 # [B, F, D]
    norms = jnp.sqrt(jnp.sum(emb * emb, axis=-1, keepdims=True))
    emb = emb * jnp.where(norms > 1.0, 1.0 / (norms + 1e-7), 1.0)
    xb = emb.reshape(B, half).astype(jnp.bfloat16)                 # [B, F*64] bf16

    vm = pl.BlockSpec(memory_space=pltpu.MemorySpace.VMEM)
    out = pl.pallas_call(
        lstm_model_kernel,
        out_shape=jax.ShapeDtypeStruct((B, 128), jnp.float32),
        in_specs=[vm] * 13,
        out_specs=vm,
    )(
        xb, rssi_feats.astype(jnp.float32),
        kp['rssi_W'], kp['rssi_b'],
        kp['lin2_Wa'], kp['lin2_Wb'], kp['lin2_b'],
        kp['l1_W'], kp['l1_b'],
        kp['l2_W'], kp['l2_b'],
        kp['head_W'], kp['head_b'],
    )
    return {'xy': out[:, :2], 'floor': jnp.maximum(out[:, 2], 0.0)}


# -------------------------------------------------------------------- pure-JAX reference
def reference_forward(bssid_feats, rssi_feats, p):
    """Pure-JAX reference on the RAW (unfolded) params, highest matmul precision."""
    hp = jax.lax.Precision.HIGHEST
    B, F = bssid_feats.shape
    D = p['emb'].shape[1]
    half = F * D
    emb = jnp.take(p['emb'], bssid_feats, axis=0)
    norms = jnp.sqrt(jnp.sum(emb * emb, axis=-1, keepdims=True))
    emb = emb * jnp.where(norms > 1.0, 1.0 / (norms + 1e-7), 1.0)
    xb = emb.reshape(B, half)

    def bn(x, prm):
        g, b, m, v = prm[0], prm[1], prm[2], prm[3]
        return (x - m) * (g / jnp.sqrt(v + EPS)) + b

    r = bn(rssi_feats, p['rssi_bn'])
    x_rssi = jnp.dot(r, p['rssi_W'], precision=hp) + p['rssi_b']
    x = jnp.concatenate([xb, x_rssi], axis=1)
    x = bn(x, p['bn_cat'])
    x = jnp.maximum(jnp.dot(x, p['lin2_W'], precision=hp) + p['lin2_b'], 0.0)
    x = (x - p['bn1c'][2]) * (p['bn1c'][0] / jnp.sqrt(p['bn1c'][3] + EPS)) + p['bn1c'][1]

    def lstm_step(x, W, b, H):
        gates = jnp.dot(x, W, precision=hp) + b
        i = jax.nn.sigmoid(gates[:, 0:H])
        g = jnp.tanh(gates[:, 2 * H:3 * H])
        o = jax.nn.sigmoid(gates[:, 3 * H:4 * H])
        return o * jnp.tanh(i * g)            # f gate * c0 == 0 exactly

    h = jnp.maximum(lstm_step(x, p['l1_W'], p['l1_b'], 128), 0.0)
    h = jnp.maximum(lstm_step(h, p['l2_W'], p['l2_b'], 16), 0.0)
    xy = jnp.dot(h, p['xy_W'], precision=hp) + p['xy_b']
    fl = jnp.maximum(jnp.dot(h, p['fl_W'], precision=hp) + p['fl_b'], 0.0)
    return {'xy': xy, 'floor': fl.reshape(-1)}


# ----------------------------------------------------------------------------- params
def init_params(key, bssid_size=1024, embedding_dim=64, num_feats=20):
    F, D = num_feats, embedding_dim
    cat = 2 * F * D
    ks = jax.random.split(key, 24)

    def uni(k, shape, fan_in):
        bound = 1.0 / jnp.sqrt(jnp.float32(fan_in))
        return jax.random.uniform(k, shape, jnp.float32, -bound, bound)

    def bn_params(k, n):
        k1, k2, k3, k4 = jax.random.split(k, 4)
        return jnp.stack([
            1.0 + 0.1 * jax.random.normal(k1, (n,)),            # gamma
            0.1 * jax.random.normal(k2, (n,)),                  # beta
            0.1 * jax.random.normal(k3, (n,)),                  # running_mean
            1.0 + 0.1 * jnp.abs(jax.random.normal(k4, (n,))),   # running_var
        ]).astype(jnp.float32)

    p = {}
    p['emb'] = jax.random.normal(ks[0], (bssid_size, D), jnp.float32)
    p['rssi_bn'] = bn_params(ks[1], F)
    p['rssi_W'] = uni(ks[2], (F, F * D), F)                     # Linear(F, F*64), [in,out]
    p['rssi_b'] = uni(ks[3], (1, F * D), F)
    p['bn_cat'] = bn_params(ks[4], cat)                         # BatchNorm1d(2560)
    p['lin2_W'] = uni(ks[5], (cat, 256), cat)                   # Linear(2560, 256)
    p['lin2_b'] = uni(ks[6], (1, 256), cat)
    p['bn1c'] = bn_params(ks[7], 1).reshape(4)                  # BatchNorm1d(1)
    # LSTM1 (256 -> 128): W_ih^T, combined bias b_ih + b_hh (h0=0 kills the W_hh term)
    p['l1_W'] = uni(ks[8], (256, 4 * 128), 128)
    p['l1_b'] = uni(ks[9], (1, 4 * 128), 128) + uni(ks[10], (1, 4 * 128), 128)
    # LSTM2 (128 -> 16)
    p['l2_W'] = uni(ks[11], (128, 4 * 16), 16)
    p['l2_b'] = uni(ks[12], (1, 4 * 16), 16) + uni(ks[13], (1, 4 * 16), 16)
    p['xy_W'] = uni(ks[14], (16, 2), 16)
    p['xy_b'] = uni(ks[15], (1, 2), 16)
    p['fl_W'] = uni(ks[16], (16, 1), 16)
    p['fl_b'] = uni(ks[17], (1, 1), 16)
    # TODO(synk): site_embedding (nn.Embedding(site_size, 64)) is never used in forward(); omitted.
    return p


if __name__ == "__main__":
    B, F = 8, 20
    BSSID_SIZE, D = 1024, 64

    key = jax.random.PRNGKey(0)
    kp_, kb, kr = jax.random.split(key, 3)
    raw = init_params(kp_, bssid_size=BSSID_SIZE, embedding_dim=D, num_feats=F)
    prepped = jax.tree_util.tree_map(lambda x: x, prepare_params(raw))  # one-time folding

    bssid_feats = jax.random.randint(kb, (B, F), 0, BSSID_SIZE, dtype=jnp.int32)
    rssi_feats = jax.random.normal(kr, (B, F), jnp.float32)

    fwd = jax.jit(lstm_model_forward)
    out = fwd(bssid_feats, rssi_feats, prepped)
    jax.block_until_ready(out)

    ref = reference_forward(bssid_feats, rssi_feats, raw)
    assert out['xy'].shape == (B, 2) and out['floor'].shape == (B,)
    # Tolerance accounts for bf16 MXU operands (f32 accumulation) on the two big matmuls.
    assert jnp.allclose(out['xy'], ref['xy'], rtol=2e-2, atol=1e-2), "xy mismatch"
    assert jnp.allclose(out['floor'], ref['floor'], rtol=2e-2, atol=1e-2), "floor mismatch"
    print("KERNEL_OK")
</pallas_src>

<mosaic_0001>
module attributes {stable_mosaic.version = 11 : i64} {
  func.func @lstm_model_kernel(%arg0: memref<8x1280xbf16, #tpu.memory_space<vmem>>, %arg1: memref<8x20xf32, #tpu.memory_space<vmem>>, %arg2: memref<20x1280xf32, #tpu.memory_space<vmem>>, %arg3: memref<1x1280xf32, #tpu.memory_space<vmem>>, %arg4: memref<1280x256xbf16, #tpu.memory_space<vmem>>, %arg5: memref<1280x256xbf16, #tpu.memory_space<vmem>>, %arg6: memref<1x256xf32, #tpu.memory_space<vmem>>, %arg7: memref<256x384xbf16, #tpu.memory_space<vmem>>, %arg8: memref<1x384xf32, #tpu.memory_space<vmem>>, %arg9: memref<128x384xf32, #tpu.memory_space<vmem>>, %arg10: memref<1x384xf32, #tpu.memory_space<vmem>>, %arg11: memref<128x128xf32, #tpu.memory_space<vmem>>, %arg12: memref<1x128xf32, #tpu.memory_space<vmem>>, %arg13: memref<8x128xf32, #tpu.memory_space<vmem>>) attributes {dimension_semantics = [], scalar_prefetch = 0 : i64, scratch_operands = 0 : i64, tpu.core_type = #tpu.core_type<tc>} {
    %c0 = arith.constant 0 : index
    %c0_0 = arith.constant 0 : index
    %0 = vector.load %arg1[%c0, %c0_0] : memref<8x20xf32, #tpu.memory_space<vmem>>, vector<8x20xf32>
    %c0_1 = arith.constant 0 : index
    %c0_2 = arith.constant 0 : index
    %1 = vector.load %arg2[%c0_1, %c0_2] : memref<20x1280xf32, #tpu.memory_space<vmem>>, vector<20x1280xf32>
    %cst = arith.constant dense<0.000000e+00> : vector<8x1280xf32>
    %2 = tpu.matmul %0, %1, %cst {dimension_numbers = #tpu.dot_dimension_numbers<[1], [0], [0], [1], [0, 0, 1, 1], [], []>} : vector<8x20xf32>, vector<20x1280xf32>, vector<8x1280xf32> -> vector<8x1280xf32>
    %c0_3 = arith.constant 0 : index
    %c0_4 = arith.constant 0 : index
    %3 = vector.load %arg3[%c0_3, %c0_4] : memref<1x1280xf32, #tpu.memory_space<vmem>>, vector<1x1280xf32>
    %4 = vector.broadcast %3 : vector<1x1280xf32> to vector<8x1280xf32>
    %5 = arith.addf %2, %4 : vector<8x1280xf32>
    %c0_5 = arith.constant 0 : index
    %c0_6 = arith.constant 0 : index
    %6 = vector.load %arg0[%c0_5, %c0_6] : memref<8x1280xbf16, #tpu.memory_space<vmem>>, vector<8x1280xbf16>
    %c0_7 = arith.constant 0 : index
    %c0_8 = arith.constant 0 : index
    %7 = vector.load %arg4[%c0_7, %c0_8] : memref<1280x256xbf16, #tpu.memory_space<vmem>>, vector<1280x256xbf16>
    %cst_9 = arith.constant dense<0.000000e+00> : vector<8x256xf32>
    %8 = tpu.matmul %6, %7, %cst_9 {dimension_numbers = #tpu.dot_dimension_numbers<[1], [0], [0], [1], [0, 0, 1, 1], [], []>} : vector<8x1280xbf16>, vector<1280x256xbf16>, vector<8x256xf32> -> vector<8x256xf32>
    %9 = arith.truncf %5 : vector<8x1280xf32> to vector<8x1280xbf16>
    %c0_10 = arith.constant 0 : index
    %c0_11 = arith.constant 0 : index
    %10 = vector.load %arg5[%c0_10, %c0_11] : memref<1280x256xbf16, #tpu.memory_space<vmem>>, vector<1280x256xbf16>
    %cst_12 = arith.constant dense<0.000000e+00> : vector<8x256xf32>
    %11 = tpu.matmul %9, %10, %cst_12 {dimension_numbers = #tpu.dot_dimension_numbers<[1], [0], [0], [1], [0, 0, 1, 1], [], []>} : vector<8x1280xbf16>, vector<1280x256xbf16>, vector<8x256xf32> -> vector<8x256xf32>
    %12 = arith.addf %8, %11 : vector<8x256xf32>
    %c0_13 = arith.constant 0 : index
    %c0_14 = arith.constant 0 : index
    %13 = vector.load %arg6[%c0_13, %c0_14] : memref<1x256xf32, #tpu.memory_space<vmem>>, vector<1x256xf32>
    %14 = vector.broadcast %13 : vector<1x256xf32> to vector<8x256xf32>
    %15 = arith.addf %12, %14 : vector<8x256xf32>
    %cst_15 = arith.constant 0.000000e+00 : f32
    %16 = vector.broadcast %cst_15 : f32 to vector<8x256xf32>
    %17 = arith.maximumf %15, %16 : vector<8x256xf32>
    %18 = arith.truncf %17 : vector<8x256xf32> to vector<8x256xbf16>
    %c0_16 = arith.constant 0 : index
    %c0_17 = arith.constant 0 : index
    %19 = vector.load %arg7[%c0_16, %c0_17] : memref<256x384xbf16, #tpu.memory_space<vmem>>, vector<256x384xbf16>
    %cst_18 = arith.constant dense<0.000000e+00> : vector<8x384xf32>
    %20 = tpu.matmul %18, %19, %cst_18 {dimension_numbers = #tpu.dot_dimension_numbers<[1], [0], [0], [1], [0, 0, 1, 1], [], []>} : vector<8x256xbf16>, vector<256x384xbf16>, vector<8x384xf32> -> vector<8x384xf32>
    %c0_19 = arith.constant 0 : index
    %c0_20 = arith.constant 0 : index
    %21 = vector.load %arg8[%c0_19, %c0_20] : memref<1x384xf32, #tpu.memory_space<vmem>>, vector<1x384xf32>
    %22 = vector.broadcast %21 : vector<1x384xf32> to vector<8x384xf32>
    %23 = arith.addf %20, %22 : vector<8x384xf32>
    %24 = vector.extract_strided_slice %23 {offsets = [0, 0], sizes = [8, 128], strides = [1, 1]} : vector<8x384xf32> to vector<8x128xf32>
    %25 = arith.negf %24 : vector<8x128xf32>
    %26 = math.exp %25 : vector<8x128xf32>
    %cst_21 = arith.constant 1.000000e+00 : f32
    %27 = vector.broadcast %cst_21 : f32 to vector<8x128xf32>
    %28 = arith.addf %27, %26 : vector<8x128xf32>
    %29 = arith.divf %27, %28 : vector<8x128xf32>
    %30 = vector.extract_strided_slice %23 {offsets = [0, 128], sizes = [8, 128], strides = [1, 1]} : vector<8x384xf32> to vector<8x128xf32>
    %31 = math.tanh %30 : vector<8x128xf32>
    %32 = vector.extract_strided_slice %23 {offsets = [0, 256], sizes = [8, 128], strides = [1, 1]} : vector<8x384xf32> to vector<8x128xf32>
    %33 = arith.negf %32 : vector<8x128xf32>
    %34 = math.exp %33 : vector<8x128xf32>
    %cst_22 = arith.constant 1.000000e+00 : f32
    %35 = vector.broadcast %cst_22 : f32 to vector<8x128xf32>
    %36 = arith.addf %35, %34 : vector<8x128xf32>
    %37 = arith.divf %35, %36 : vector<8x128xf32>
    %38 = arith.mulf %29, %31 : vector<8x128xf32>
    %39 = math.tanh %38 : vector<8x128xf32>
    %40 = arith.mulf %37, %39 : vector<8x128xf32>
    %cst_23 = arith.constant 0.000000e+00 : f32
    %41 = vector.broadcast %cst_23 : f32 to vector<8x128xf32>
    %42 = arith.maximumf %40, %41 : vector<8x128xf32>
    %c0_24 = arith.constant 0 : index
    %c0_25 = arith.constant 0 : index
    %43 = vector.load %arg9[%c0_24, %c0_25] : memref<128x384xf32, #tpu.memory_space<vmem>>, vector<128x384xf32>
    %cst_26 = arith.constant dense<0.000000e+00> : vector<8x384xf32>
    %44 = tpu.matmul %42, %43, %cst_26 {dimension_numbers = #tpu.dot_dimension_numbers<[1], [0], [0], [1], [0, 0, 1, 1], [], []>} : vector<8x128xf32>, vector<128x384xf32>, vector<8x384xf32> -> vector<8x384xf32>
    %c0_27 = arith.constant 0 : index
    %c0_28 = arith.constant 0 : index
    %45 = vector.load %arg10[%c0_27, %c0_28] : memref<1x384xf32, #tpu.memory_space<vmem>>, vector<1x384xf32>
    %46 = vector.broadcast %45 : vector<1x384xf32> to vector<8x384xf32>
    %47 = arith.addf %44, %46 : vector<8x384xf32>
    %48 = vector.extract_strided_slice %47 {offsets = [0, 0], sizes = [8, 128], strides = [1, 1]} : vector<8x384xf32> to vector<8x128xf32>
    %49 = arith.negf %48 : vector<8x128xf32>
    %50 = math.exp %49 : vector<8x128xf32>
    %cst_29 = arith.constant 1.000000e+00 : f32
    %51 = vector.broadcast %cst_29 : f32 to vector<8x128xf32>
    %52 = arith.addf %51, %50 : vector<8x128xf32>
    %53 = arith.divf %51, %52 : vector<8x128xf32>
    %54 = vector.extract_strided_slice %47 {offsets = [0, 128], sizes = [8, 128], strides = [1, 1]} : vector<8x384xf32> to vector<8x128xf32>
    %55 = math.tanh %54 : vector<8x128xf32>
    %56 = vector.extract_strided_slice %47 {offsets = [0, 256], sizes = [8, 128], strides = [1, 1]} : vector<8x384xf32> to vector<8x128xf32>
    %57 = arith.negf %56 : vector<8x128xf32>
    %58 = math.exp %57 : vector<8x128xf32>
    %cst_30 = arith.constant 1.000000e+00 : f32
    %59 = vector.broadcast %cst_30 : f32 to vector<8x128xf32>
    %60 = arith.addf %59, %58 : vector<8x128xf32>
    %61 = arith.divf %59, %60 : vector<8x128xf32>
    %62 = arith.mulf %53, %55 : vector<8x128xf32>
    %63 = math.tanh %62 : vector<8x128xf32>
    %64 = arith.mulf %61, %63 : vector<8x128xf32>
    %cst_31 = arith.constant 0.000000e+00 : f32
    %65 = vector.broadcast %cst_31 : f32 to vector<8x128xf32>
    %66 = arith.maximumf %64, %65 : vector<8x128xf32>
    %c0_32 = arith.constant 0 : index
    %c0_33 = arith.constant 0 : index
    %67 = vector.load %arg11[%c0_32, %c0_33] : memref<128x128xf32, #tpu.memory_space<vmem>>, vector<128x128xf32>
    %cst_34 = arith.constant dense<0.000000e+00> : vector<8x128xf32>
    %68 = tpu.matmul %66, %67, %cst_34 {dimension_numbers = #tpu.dot_dimension_numbers<[1], [0], [0], [1], [0, 0, 1, 1], [], []>} : vector<8x128xf32>, vector<128x128xf32>, vector<8x128xf32> -> vector<8x128xf32>
    %c0_35 = arith.constant 0 : index
    %c0_36 = arith.constant 0 : index
    %69 = vector.load %arg12[%c0_35, %c0_36] : memref<1x128xf32, #tpu.memory_space<vmem>>, vector<1x128xf32>
    %70 = vector.broadcast %69 : vector<1x128xf32> to vector<8x128xf32>
    %71 = arith.addf %68, %70 : vector<8x128xf32>
    %72 = tpu.iota {dimensions = array<i32: 1>} : vector<8x128xi32>
    %c2_i32 = arith.constant 2 : i32
    %73 = vector.broadcast %c2_i32 : i32 to vector<8x128xi32>
    %74 = arith.cmpi sge, %72, %73 : vector<8x128xi32>
    %cst_37 = arith.constant 0.000000e+00 : f32
    %75 = vector.broadcast %cst_37 : f32 to vector<8x128xf32>
    %76 = arith.maximumf %71, %75 : vector<8x128xf32>
    %77 = arith.select %74, %76, %71 : vector<8x128xi1>, vector<8x128xf32>
    %c0_38 = arith.constant 0 : index
    %c0_39 = arith.constant 0 : index
    %78 = vector.load %arg13[%c0_38, %c0_39] : memref<8x128xf32, #tpu.memory_space<vmem>>, vector<8x128xf32>
    tpu.vector_store %arg13[%c0_38, %c0_39], %77 {strides = array<i32>} : memref<8x128xf32, #tpu.memory_space<vmem>>, vector<8x128xf32>,
    return
  }
}

</mosaic_0001>

<llo_original>
// kernel: lstm_model_forward.1
$region0: #{lstm_model_forward.1}
  #allocation0 [shape = 'u32[]', space=smem, size = 0x4, offset = 0x4, fixed_abs, tag = 'smem constant byte address 0x4 - core index']
  #allocation1 [shape = 'u32[72,128]{1,0:T(1,128)}', space=vmem, size = 0x9000, scoped, tag = 'internal scratch']
  %s0 = inlined_call_operand.vmem [shape: bf16[8,1280], index: 0, kind: input, shape index: {}]
  %s1 = inlined_call_operand.vmem [shape: f32[8,20], index: 1, kind: input, shape index: {}]
  %s2 = inlined_call_operand.vmem [shape: f32[20,1280], index: 2, kind: input, shape index: {}]
  %s3 = inlined_call_operand.vmem [shape: f32[1,1280], index: 3, kind: input, shape index: {}]
  %s4 = inlined_call_operand.vmem [shape: bf16[1280,256], index: 4, kind: input, shape index: {}]
  %s5 = inlined_call_operand.vmem [shape: bf16[1280,256], index: 5, kind: input, shape index: {}]
  %s6 = inlined_call_operand.vmem [shape: f32[1,256], index: 6, kind: input, shape index: {}]
  %s7 = inlined_call_operand.vmem [shape: bf16[256,384], index: 7, kind: input, shape index: {}]
  %s8 = inlined_call_operand.vmem [shape: f32[1,384], index: 8, kind: input, shape index: {}]
  %s9 = inlined_call_operand.vmem [shape: f32[128,384], index: 9, kind: input, shape index: {}]
  %s10 = inlined_call_operand.vmem [shape: f32[1,384], index: 10, kind: input, shape index: {}]
  %s11 = inlined_call_operand.vmem [shape: f32[128,128], index: 11, kind: input, shape index: {}]
  %s12 = inlined_call_operand.vmem [shape: f32[1,128], index: 12, kind: input, shape index: {}]
  %s13 = inlined_call_operand.vmem [shape: f32[8,128], index: 13, kind: output, shape index: {}]
  %s14 = sld [smem:[#allocation0]]
  $region62: #{lstm_model_forward.1} parent=0
    _
  %s16 = ssub.s32 1, %s14
  %s17 = scalar_select 0, %s16, %s14
  // Predicated region
  $region2: #{lstm_model_forward.1} parent=0 // pred_check
    _
  $region3: #{lstm_model_forward.1} parent=0 // pred_check_branch
    %19 = sbr.rel (0) target = $region5
  $region4: #{lstm_model_forward.1} parent=0 // pred_region
    _
  $region5: #{lstm_model_forward.1} parent=0 // pred_fallthru
    _
  // Predicated region
  $region6: #{lstm_model_forward.1} parent=0 // pred_check
    _
  $region7: #{lstm_model_forward.1} parent=0 // pred_check_branch
    %21 = sbr.rel (0) target = $region9
  $region8: #{lstm_model_forward.1} parent=0 // pred_region
    _
  $region9: #{lstm_model_forward.1} parent=0 // pred_fallthru
    _
  // Predicated region
  $region10: #{lstm_model_forward.1} parent=0 // pred_check
    _
  $region11: #{lstm_model_forward.1} parent=0 // pred_check_branch
    %23 = sbr.rel (0) target = $region13
  $region12: #{lstm_model_forward.1} parent=0 // pred_region
    _
  $region13: #{lstm_model_forward.1} parent=0 // pred_fallthru
    _
  // Predicated region
  $region14: #{lstm_model_forward.1} parent=0 // pred_check
    _
  $region15: #{lstm_model_forward.1} parent=0 // pred_check_branch
    %25 = sbr.rel (0) target = $region17
  $region16: #{lstm_model_forward.1} parent=0 // pred_region
    _
  $region17: #{lstm_model_forward.1} parent=0 // pred_fallthru
    _
  // Predicated region
  $region18: #{lstm_model_forward.1} parent=0 // pred_check
    _
  $region19: #{lstm_model_forward.1} parent=0 // pred_check_branch
    %27 = sbr.rel (0) target = $region21
  $region20: #{lstm_model_forward.1} parent=0 // pred_region
    _
  $region21: #{lstm_model_forward.1} parent=0 // pred_fallthru
    _
  // Predicated region
  $region22: #{lstm_model_forward.1} parent=0 // pred_check
    _
  $region23: #{lstm_model_forward.1} parent=0 // pred_check_branch
    %29 = sbr.rel (0) target = $region25
  $region24: #{lstm_model_forward.1} parent=0 // pred_region
    _
  $region25: #{lstm_model_forward.1} parent=0 // pred_fallthru
    _
  // Predicated region
  $region26: #{lstm_model_forward.1} parent=0 // pred_check
    _
  $region27: #{lstm_model_forward.1} parent=0 // pred_check_branch
    %31 = sbr.rel (0) target = $region29
  $region28: #{lstm_model_forward.1} parent=0 // pred_region
    _
  $region29: #{lstm_model_forward.1} parent=0 // pred_fallthru
    _
  // Predicated region
  $region30: #{lstm_model_forward.1} parent=0 // pred_check
    _
  $region31: #{lstm_model_forward.1} parent=0 // pred_check_branch
    %33 = sbr.rel (0) target = $region33
  $region32: #{lstm_model_forward.1} parent=0 // pred_region
    _
  $region33: #{lstm_model_forward.1} parent=0 // pred_fallthru
    _
  // Predicated region
  $region34: #{lstm_model_forward.1} parent=0 // pred_check
    _
  $region35: #{lstm_model_forward.1} parent=0 // pred_check_branch
    %35 = sbr.rel (0) target = $region37
  $region36: #{lstm_model_forward.1} parent=0 // pred_region
    _
  $region37: #{lstm_model_forward.1} parent=0 // pred_fallthru
    _
  // Predicated region
  $region38: #{lstm_model_forward.1} parent=0 // pred_check
    _
  $region39: #{lstm_model_forward.1} parent=0 // pred_check_branch
    %37 = sbr.rel (0) target = $region41
  $region40: #{lstm_model_forward.1} parent=0 // pred_region
    _
  $region41: #{lstm_model_forward.1} parent=0 // pred_fallthru
    _
  // Predicated region
  $region42: #{lstm_model_forward.1} parent=0 // pred_check
    _
  $region43: #{lstm_model_forward.1} parent=0 // pred_check_branch
    %39 = sbr.rel (0) target = $region45
  $region44: #{lstm_model_forward.1} parent=0 // pred_region
    _
  $region45: #{lstm_model_forward.1} parent=0 // pred_fallthru
    _
  // Predicated region
  $region46: #{lstm_model_forward.1} parent=0 // pred_check
    _
  $region47: #{lstm_model_forward.1} parent=0 // pred_check_branch
    %41 = sbr.rel (0) target = $region49
  $region48: #{lstm_model_forward.1} parent=0 // pred_region
    _
  $region49: #{lstm_model_forward.1} parent=0 // pred_fallthru
    _
  // Predicated region
  $region50: #{lstm_model_forward.1} parent=0 // pred_check
    _
  $region51: #{lstm_model_forward.1} parent=0 // pred_check_branch
    %43 = sbr.rel (0) target = $region53
  $region52: #{lstm_model_forward.1} parent=0 // pred_region
    _
  $region53: #{lstm_model_forward.1} parent=0 // pred_fallthru
    _
  %v44 = vld [vmem:[%s1] sm:$0xff]
  %v45 = vld [vmem:[%s2] sm:$0xff]
  %v46 = vld [vmem:[%s2 + $0x8] sm:$0xff]
  %v47 = vld [vmem:[%s2 + $0x10] sm:$0xff]
  %v48 = vld [vmem:[%s2 + $0x18] sm:$0xff]
  %v49 = vld [vmem:[%s2 + $0x20] sm:$0xff]
  %v50 = vld [vmem:[%s2 + $0x28] sm:$0xff]
  %v51 = vld [vmem:[%s2 + $0x30] sm:$0xff]
  %v52 = vld [vmem:[%s2 + $0x38] sm:$0xff]
  %v53 = vld [vmem:[%s2 + $0x40] sm:$0xff]
  %v54 = vld [vmem:[%s2 + $0x48] sm:$0xff]
  %v55 = vld [vmem:[%s2 + $0x50] sm:$0xff]
  %v56 = vld [vmem:[%s2 + $0x58] sm:$0xff]
  %v57 = vld [vmem:[%s2 + $0x60] sm:$0xff]
  %v58 = vld [vmem:[%s2 + $0x68] sm:$0xff]
  %v59 = vld [vmem:[%s2 + $0x70] sm:$0xff]
  %v60 = vld [vmem:[%s2 + $0x78] sm:$0xff]
  %v61 = vld [vmem:[%s2 + $0x80] sm:$0xff]
  %v62 = vld [vmem:[%s2 + $0x88] sm:$0xff]
  %v63 = vld [vmem:[%s2 + $0x90] sm:$0xff]
  %v64 = vld [vmem:[%s2 + $0x98] sm:$0xff]
  %v65 = vld [vmem:[%s2 + $0xa0] sm:$0xf]
  %v66 = vld [vmem:[%s2 + $0xa8] sm:$0xf]
  %v67 = vld [vmem:[%s2 + $0xb0] sm:$0xf]
  %v68 = vld [vmem:[%s2 + $0xb8] sm:$0xf]
  %v69 = vld [vmem:[%s2 + $0xc0] sm:$0xf]
  %v70 = vld [vmem:[%s2 + $0xc8] sm:$0xf]
  %v71 = vld [vmem:[%s2 + $0xd0] sm:$0xf]
  %v72 = vld [vmem:[%s2 + $0xd8] sm:$0xf]
  %v73 = vld [vmem:[%s2 + $0xe0] sm:$0xf]
  %v74 = vld [vmem:[%s2 + $0xe8] sm:$0xf]
  %v75 = vld [vmem:[%s3] sm:$0xff]
  %v76 = vld [vmem:[%s3 + $0x8] sm:$0x3]
  %v79 = vperm.slane %v75, 0
  %v80 = vperm.slane %v75, 1
  %v81 = vperm.slane %v75, 2
  %v82 = vperm.slane %v75, 3
  %v83 = vperm.slane %v75, 4
  %v84 = vperm.slane %v75, 5
  %v85 = vperm.slane %v75, 6
  %v86 = vperm.slane %v75, 7
  %v87 = vperm.slane %v76, 0
  %v88 = vperm.slane %v76, 1
  %vm99 = vcmask 162816
  %v101 = vsel %vm99, %v44, 0
  %vm103 = vcmask 1043456
  %v105 = vsel %vm103, %v65, 0
  %v108 = vsel %vm103, %v66, 0
  %v111 = vsel %vm103, %v67, 0
  %v114 = vsel %vm103, %v68, 0
  %v117 = vsel %vm103, %v69, 0
  %v120 = vsel %vm103, %v70, 0
  %v123 = vsel %vm103, %v71, 0
  %v126 = vsel %vm103, %v72, 0
  %v129 = vsel %vm103, %v73, 0
  %v132 = vsel %vm103, %v74, 0
  %134 = vmatpush.msra.mxu0 0.0
  %135 = vmatpush.msra.mxu0 0.0
  %136 = vmatpush.msra.mxu0 0.0
  %137 = vmatpush.msra.mxu0 0.0
  %138 = vmatpush.msra.mxu0 0.0
  %139 = vmatpush.msra.mxu0 0.0
  %140 = vmatpush.msra.mxu0 0.0
  %141 = vmatpush.msra.mxu0 0.0
  %142 = vmatpush.msra.mxu0 0.0
  %143 = vmatpush.msra.mxu0 0.0
  %144 = vmatpush.msra.mxu0 0.0
  %145 = vmatpush.msra.mxu0 0.0
  %146 = vmatpush.msra.mxu0 0.0
  %147 = vmatpush.msra.mxu0 %v105
  %148 = vmatpush.msra.mxu0 %v55
  %149 = vmatpush.msra.mxu0 %v45
  %150 = vmatmul.f32.gmra.mxu0 %v101
  %v151 = vpop.f32.mrf.mxu0
  %v152 = vadd.f32 %v79, %v151
  %153 = vdwg.mxu0
  %154 = vmatpush.msra.mxu0 0.0
  %155 = vmatpush.msra.mxu0 0.0
  %156 = vmatpush.msra.mxu0 0.0
  %157 = vmatpush.msra.mxu0 0.0
  %158 = vmatpush.msra.mxu0 0.0
  %159 = vmatpush.msra.mxu0 0.0
  %160 = vmatpush.msra.mxu0 0.0
  %161 = vmatpush.msra.mxu0 0.0
  %162 = vmatpush.msra.mxu0 0.0
  %163 = vmatpush.msra.mxu0 0.0
  %164 = vmatpush.msra.mxu0 0.0
  %165 = vmatpush.msra.mxu0 0.0
  %166 = vmatpush.msra.mxu0 0.0
  %167 = vmatpush.msra.mxu0 %v108
  %168 = vmatpush.msra.mxu0 %v56
  %169 = vmatpush.msra.mxu0 %v46
  %170 = vmatmul.f32.gmra.mxu0 %v101
  %v171 = vpop.f32.mrf.mxu0
  %v172 = vadd.f32 %v80, %v171
  %173 = vdwg.mxu0
  %174 = vmatpush.msra.mxu0 0.0
  %175 = vmatpush.msra.mxu0 0.0
  %176 = vmatpush.msra.mxu0 0.0
  %177 = vmatpush.msra.mxu0 0.0
  %178 = vmatpush.msra.mxu0 0.0
  %179 = vmatpush.msra.mxu0 0.0
  %180 = vmatpush.msra.mxu0 0.0
  %181 = vmatpush.msra.mxu0 0.0
  %182 = vmatpush.msra.mxu0 0.0
  %183 = vmatpush.msra.mxu0 0.0
  %184 = vmatpush.msra.mxu0 0.0
  %185 = vmatpush.msra.mxu0 0.0
  %186 = vmatpush.msra.mxu0 0.0
  %187 = vmatpush.msra.mxu0 %v111
  %188 = vmatpush.msra.mxu0 %v57
  %189 = vmatpush.msra.mxu0 %v47
  %190 = vmatmul.f32.gmra.mxu0 %v101
  %v191 = vpop.f32.mrf.mxu0
  %v192 = vadd.f32 %v81, %v191
  %193 = vdwg.mxu0
  %194 = vmatpush.msra.mxu0 0.0
  %195 = vmatpush.msra.mxu0 0.0
  %196 = vmatpush.msra.mxu0 0.0
  %197 = vmatpush.msra.mxu0 0.0
  %198 = vmatpush.msra.mxu0 0.0
  %199 = vmatpush.msra.mxu0 0.0
  %200 = vmatpush.msra.mxu0 0.0
  %201 = vmatpush.msra.mxu0 0.0
  %202 = vmatpush.msra.mxu0 0.0
  %203 = vmatpush.msra.mxu0 0.0
  %204 = vmatpush.msra.mxu0 0.0
  %205 = vmatpush.msra.mxu0 0.0
  %206 = vmatpush.msra.mxu0 0.0
  %207 = vmatpush.msra.mxu0 %v114
  %208 = vmatpush.msra.mxu0 %v58
  %209 = vmatpush.msra.mxu0 %v48
  %210 = vmatmul.f32.gmra.mxu0 %v101
  %v211 = vpop.f32.mrf.mxu0
  %v212 = vadd.f32 %v82, %v211
  %213 = vdwg.mxu0
  %214 = vmatpush.msra.mxu0 0.0
  %215 = vmatpush.msra.mxu0 0.0
  %216 = vmatpush.msra.mxu0 0.0
  %217 = vmatpush.msra.mxu0 0.0
  %218 = vmatpush.msra.mxu0 0.0
  %219 = vmatpush.msra.mxu0 0.0
  %220 = vmatpush.msra.mxu0 0.0
  %221 = vmatpush.msra.mxu0 0.0
  %222 = vmatpush.msra.mxu0 0.0
  %223 = vmatpush.msra.mxu0 0.0
  %224 = vmatpush.msra.mxu0 0.0
  %225 = vmatpush.msra.mxu0 0.0
  %226 = vmatpush.msra.mxu0 0.0
  %227 = vmatpush.msra.mxu0 %v117
  %228 = vmatpush.msra.mxu0 %v59
  %229 = vmatpush.msra.mxu0 %v49
  %230 = vmatmul.f32.gmra.mxu0 %v101
  %v231 = vpop.f32.mrf.mxu0
  %v232 = vadd.f32 %v83, %v231
  %233 = vdwg.mxu0
  %234 = vmatpush.msra.mxu0 0.0
  %235 = vmatpush.msra.mxu0 0.0
  %236 = vmatpush.msra.mxu0 0.0
  %237 = vmatpush.msra.mxu0 0.0
  %238 = vmatpush.msra.mxu0 0.0
  %239 = vmatpush.msra.mxu0 0.0
  %240 = vmatpush.msra.mxu0 0.0
  %241 = vmatpush.msra.mxu0 0.0
  %242 = vmatpush.msra.mxu0 0.0
  %243 = vmatpush.msra.mxu0 0.0
  %244 = vmatpush.msra.mxu0 0.0
  %245 = vmatpush.msra.mxu0 0.0
  %246 = vmatpush.msra.mxu0 0.0
  %247 = vmatpush.msra.mxu0 %v120
  %248 = vmatpush.msra.mxu0 %v60
  %249 = vmatpush.msra.mxu0 %v50
  %250 = vmatmul.f32.gmra.mxu0 %v101
  %v251 = vpop.f32.mrf.mxu0
  %v252 = vadd.f32 %v84, %v251
  %253 = vdwg.mxu0
  %254 = vmatpush.msra.mxu0 0.0
  %255 = vmatpush.msra.mxu0 0.0
  %256 = vmatpush.msra.mxu0 0.0
  %257 = vmatpush.msra.mxu0 0.0
  %258 = vmatpush.msra.mxu0 0.0
  %259 = vmatpush.msra.mxu0 0.0
  %260 = vmatpush.msra.mxu0 0.0
  %261 = vmatpush.msra.mxu0 0.0
  %262 = vmatpush.msra.mxu0 0.0
  %263 = vmatpush.msra.mxu0 0.0
  %264 = vmatpush.msra.mxu0 0.0
  %265 = vmatpush.msra.mxu0 0.0
  %266 = vmatpush.msra.mxu0 0.0
  %267 = vmatpush.msra.mxu0 %v123
  %268 = vmatpush.msra.mxu0 %v61
  %269 = vmatpush.msra.mxu0 %v51
  %270 = vmatmul.f32.gmra.mxu0 %v101
  %v271 = vpop.f32.mrf.mxu0
  %v272 = vadd.f32 %v85, %v271
  %273 = vdwg.mxu0
  %274 = vmatpush.msra.mxu0 0.0
  %275 = vmatpush.msra.mxu0 0.0
  %276 = vmatpush.msra.mxu0 0.0
  %277 = vmatpush.msra.mxu0 0.0
  %278 = vmatpush.msra.mxu0 0.0
  %279 = vmatpush.msra.mxu0 0.0
  %280 = vmatpush.msra.mxu0 0.0
  %281 = vmatpush.msra.mxu0 0.0
  %282 = vmatpush.msra.mxu0 0.0
  %283 = vmatpush.msra.mxu0 0.0
  %284 = vmatpush.msra.mxu0 0.0
  %285 = vmatpush.msra.mxu0 0.0
  %286 = vmatpush.msra.mxu0 0.0
  %287 = vmatpush.msra.mxu0 %v126
  %288 = vmatpush.msra.mxu0 %v62
  %289 = vmatpush.msra.mxu0 %v52
  %290 = vmatmul.f32.gmra.mxu0 %v101
  %v291 = vpop.f32.mrf.mxu0
  %v292 = vadd.f32 %v86, %v291
  %293 = vdwg.mxu0
  %294 = vmatpush.msra.mxu0 0.0
  %295 = vmatpush.msra.mxu0 0.0
  %296 = vmatpush.msra.mxu0 0.0
  %297 = vmatpush.msra.mxu0 0.0
  %298 = vmatpush.msra.mxu0 0.0
  %299 = vmatpush.msra.mxu0 0.0
  %300 = vmatpush.msra.mxu0 0.0
  %301 = vmatpush.msra.mxu0 0.0
  %302 = vmatpush.msra.mxu0 0.0
  %303 = vmatpush.msra.mxu0 0.0
  %304 = vmatpush.msra.mxu0 0.0
  %305 = vmatpush.msra.mxu0 0.0
  %306 = vmatpush.msra.mxu0 0.0
  %307 = vmatpush.msra.mxu0 %v129
  %308 = vmatpush.msra.mxu0 %v63
  %309 = vmatpush.msra.mxu0 %v53
  %310 = vmatmul.f32.gmra.mxu0 %v101
  %v311 = vpop.f32.mrf.mxu0
  %v312 = vadd.f32 %v87, %v311
  %313 = vdwg.mxu0
  %314 = vmatpush.msra.mxu0 0.0
  %315 = vmatpush.msra.mxu0 0.0
  %316 = vmatpush.msra.mxu0 0.0
  %317 = vmatpush.msra.mxu0 0.0
  %318 = vmatpush.msra.mxu0 0.0
  %319 = vmatpush.msra.mxu0 0.0
  %320 = vmatpush.msra.mxu0 0.0
  %321 = vmatpush.msra.mxu0 0.0
  %322 = vmatpush.msra.mxu0 0.0
  %323 = vmatpush.msra.mxu0 0.0
  %324 = vmatpush.msra.mxu0 0.0
  %325 = vmatpush.msra.mxu0 0.0
  %326 = vmatpush.msra.mxu0 0.0
  %327 = vmatpush.msra.mxu0 %v132
  %328 = vmatpush.msra.mxu0 %v64
  %329 = vmatpush.msra.mxu0 %v54
  %330 = vmatmul.f32.gmra.mxu0 %v101
  %v331 = vpop.f32.mrf.mxu0
  %v332 = vadd.f32 %v88, %v331
  %333 = vdwg.mxu0
  %v334 = vld [vmem:[%s0] sm:$0xff]
  %v335 = vld [vmem:[%s0 + $0x8] sm:$0xff]
  %v336 = vld [vmem:[%s0 + $0x10] sm:$0xff]
  %v337 = vld [vmem:[%s0 + $0x18] sm:$0xff]
  %v338 = vld [vmem:[%s0 + $0x20] sm:$0xff]
  %v339 = vld [vmem:[%s4] sm:$0xff]
  %v340 = vld [vmem:[%s4 + $0x8] sm:$0xff]
  %v341 = vld [vmem:[%s4 + $0x10] sm:$0xff]
  %v342 = vld [vmem:[%s4 + $0x18] sm:$0xff]
  %v343 = vld [vmem:[%s4 + $0x20] sm:$0xff]
  %v344 = vld [vmem:[%s4 + $0x28] sm:$0xff]
  %v345 = vld [vmem:[%s4 + $0x30] sm:$0xff]
  %v346 = vld [vmem:[%s4 + $0x38] sm:$0xff]
  %v347 = vld [vmem:[%s4 + $0x40] sm:$0xff]
  %v348 = vld [vmem:[%s4 + $0x48] sm:$0xff]
  %v349 = vld [vmem:[%s4 + $0x50] sm:$0xff]
  %v350 = vld [vmem:[%s4 + $0x58] sm:$0xff]
  %v351 = vld [vmem:[%s4 + $0x60] sm:$0xff]
  %v352 = vld [vmem:[%s4 + $0x68] sm:$0xff]
  %v353 = vld [vmem:[%s4 + $0x70] sm:$0xff]
  %v354 = vld [vmem:[%s4 + $0x78] sm:$0xff]
  %v355 = vld [vmem:[%s4 + $0x80] sm:$0xff]
  %v356 = vld [vmem:[%s4 + $0x88] sm:$0xff]
  %v357 = vld [vmem:[%s4 + $0x90] sm:$0xff]
  %v358 = vld [vmem:[%s4 + $0x98] sm:$0xff]
  %v359 = vld [vmem:[%s4 + $0xa0] sm:$0xff]
  %v360 = vld [vmem:[%s4 + $0xa8] sm:$0xff]
  %v361 = vld [vmem:[%s4 + $0xb0] sm:$0xff]
  %v362 = vld [vmem:[%s4 + $0xb8] sm:$0xff]
  %v363 = vld [vmem:[%s4 + $0xc0] sm:$0xff]
  %v364 = vld [vmem:[%s4 + $0xc8] sm:$0xff]
  %v365 = vld [vmem:[%s4 + $0xd0] sm:$0xff]
  %v366 = vld [vmem:[%s4 + $0xd8] sm:$0xff]
  %v367 = vld [vmem:[%s4 + $0xe0] sm:$0xff]
  %v368 = vld [vmem:[%s4 + $0xe8] sm:$0xff]
  %v369 = vld [vmem:[%s4 + $0xf0] sm:$0xff]
  %v370 = vld [vmem:[%s4 + $0xf8] sm:$0xff]
  %v371 = vld [vmem:[%s4 + $0x100] sm:$0xff]
  %v372 = vld [vmem:[%s4 + $0x108] sm:$0xff]
  %v373 = vld [vmem:[%s4 + $0x110] sm:$0xff]
  %v374 = vld [vmem:[%s4 + $0x118] sm:$0xff]
  %v375 = vld [vmem:[%s4 + $0x120] sm:$0xff]
  %v376 = vld [vmem:[%s4 + $0x128] sm:$0xff]
  %v377 = vld [vmem:[%s4 + $0x130] sm:$0xff]
  %v378 = vld [vmem:[%s4 + $0x138] sm:$0xff]
  %v379 = vld [vmem:[%s4 + $0x140] sm:$0xff]
  %v380 = vld [vmem:[%s4 + $0x148] sm:$0xff]
  %v381 = vld [vmem:[%s4 + $0x150] sm:$0xff]
  %v382 = vld [vmem:[%s4 + $0x158] sm:$0xff]
  %v383 = vld [vmem:[%s4 + $0x160] sm:$0xff]
  %v384 = vld [vmem:[%s4 + $0x168] sm:$0xff]
  %v385 = vld [vmem:[%s4 + $0x170] sm:$0xff]
  %v386 = vld [vmem:[%s4 + $0x178] sm:$0xff]
  %v387 = vld [vmem:[%s4 + $0x180] sm:$0xff]
  %v388 = vld [vmem:[%s4 + $0x188] sm:$0xff]
  %v389 = vld [vmem:[%s4 + $0x190] sm:$0xff]
  %v390 = vld [vmem:[%s4 + $0x198] sm:$0xff]
  %v391 = vld [vmem:[%s4 + $0x1a0] sm:$0xff]
  %v392 = vld [vmem:[%s4 + $0x1a8] sm:$0xff]
  %v393 = vld [vmem:[%s4 + $0x1b0] sm:$0xff]
  %v394 = vld [vmem:[%s4 + $0x1b8] sm:$0xff]
  %v395 = vld [vmem:[%s4 + $0x1c0] sm:$0xff]
  %v396 = vld [vmem:[%s4 + $0x1c8] sm:$0xff]
  %v397 = vld [vmem:[%s4 + $0x1d0] sm:$0xff]
  %v398 = vld [vmem:[%s4 + $0x1d8] sm:$0xff]
  %v399 = vld [vmem:[%s4 + $0x1e0] sm:$0xff]
  %v400 = vld [vmem:[%s4 + $0x1e8] sm:$0xff]
  %v401 = vld [vmem:[%s4 + $0x1f0] sm:$0xff]
  %v402 = vld [vmem:[%s4 + $0x1f8] sm:$0xff]
  %v403 = vld [vmem:[%s4 + $0x200] sm:$0xff]
  %v404 = vld [vmem:[%s4 + $0x208] sm:$0xff]
  %v405 = vld [vmem:[%s4 + $0x210] sm:$0xff]
  %v406 = vld [vmem:[%s4 + $0x218] sm:$0xff]
  %v407 = vld [vmem:[%s4 + $0x220] sm:$0xff]
  %v408 = vld [vmem:[%s4 + $0x228] sm:$0xff]
  %v409 = vld [vmem:[%s4 + $0x230] sm:$0xff]
  %v410 = vld [vmem:[%s4 + $0x238] sm:$0xff]
  %v411 = vld [vmem:[%s4 + $0x240] sm:$0xff]
  %v412 = vld [vmem:[%s4 + $0x248] sm:$0xff]
  %v413 = vld [vmem:[%s4 + $0x250] sm:$0xff]
  %v414 = vld [vmem:[%s4 + $0x258] sm:$0xff]
  %v415 = vld [vmem:[%s4 + $0x260] sm:$0xff]
  %v416 = vld [vmem:[%s4 + $0x268] sm:$0xff]
  %v417 = vld [vmem:[%s4 + $0x270] sm:$0xff]
  %v418 = vld [vmem:[%s4 + $0x278] sm:$0xff]
  %v419 = vld [vmem:[%s4 + $0x280] sm:$0xff]
  %v420 = vld [vmem:[%s4 + $0x288] sm:$0xff]
  %v421 = vld [vmem:[%s4 + $0x290] sm:$0xff]
  %v422 = vld [vmem:[%s4 + $0x298] sm:$0xff]
  %v423 = vld [vmem:[%s4 + $0x2a0] sm:$0xff]
  %v424 = vld [vmem:[%s4 + $0x2a8] sm:$0xff]
  %v425 = vld [vmem:[%s4 + $0x2b0] sm:$0xff]
  %v426 = vld [vmem:[%s4 + $0x2b8] sm:$0xff]
  %v427 = vld [vmem:[%s4 + $0x2c0] sm:$0xff]
  %v428 = vld [vmem:[%s4 + $0x2c8] sm:$0xff]
  %v429 = vld [vmem:[%s4 + $0x2d0] sm:$0xff]
  %v430 = vld [vmem:[%s4 + $0x2d8] sm:$0xff]
  %v431 = vld [vmem:[%s4 + $0x2e0] sm:$0xff]
  %v432 = vld [vmem:[%s4 + $0x2e8] sm:$0xff]
  %v433 = vld [vmem:[%s4 + $0x2f0] sm:$0xff]
  %v434 = vld [vmem:[%s4 + $0x2f8] sm:$0xff]
  %v435 = vld [vmem:[%s4 + $0x300] sm:$0xff]
  %v436 = vld [vmem:[%s4 + $0x308] sm:$0xff]
  %v437 = vld [vmem:[%s4 + $0x310] sm:$0xff]
  %v438 = vld [vmem:[%s4 + $0x318] sm:$0xff]
  %v439 = vld [vmem:[%s4 + $0x320] sm:$0xff]
  %v440 = vld [vmem:[%s4 + $0x328] sm:$0xff]
  %v441 = vld [vmem:[%s4 + $0x330] sm:$0xff]
  %v442 = vld [vmem:[%s4 + $0x338] sm:$0xff]
  %v443 = vld [vmem:[%s4 + $0x340] sm:$0xff]
  %v444 = vld [vmem:[%s4 + $0x348] sm:$0xff]
  %v445 = vld [vmem:[%s4 + $0x350] sm:$0xff]
  %v446 = vld [vmem:[%s4 + $0x358] sm:$0xff]
  %v447 = vld [vmem:[%s4 + $0x360] sm:$0xff]
  %v448 = vld [vmem:[%s4 + $0x368] sm:$0xff]
  %v449 = vld [vmem:[%s4 + $0x370] sm:$0xff]
  %v450 = vld [vmem:[%s4 + $0x378] sm:$0xff]
  %v451 = vld [vmem:[%s4 + $0x380] sm:$0xff]
  %v452 = vld [vmem:[%s4 + $0x388] sm:$0xff]
  %v453 = vld [vmem:[%s4 + $0x390] sm:$0xff]
  %v454 = vld [vmem:[%s4 + $0x398] sm:$0xff]
  %v455 = vld [vmem:[%s4 + $0x3a0] sm:$0xff]
  %v456 = vld [vmem:[%s4 + $0x3a8] sm:$0xff]
  %v457 = vld [vmem:[%s4 + $0x3b0] sm:$0xff]
  %v458 = vld [vmem:[%s4 + $0x3b8] sm:$0xff]
  %v459 = vld [vmem:[%s4 + $0x3c0] sm:$0xff]
  %v460 = vld [vmem:[%s4 + $0x3c8] sm:$0xff]
  %v461 = vld [vmem:[%s4 + $0x3d0] sm:$0xff]
  %v462 = vld [vmem:[%s4 + $0x3d8] sm:$0xff]
  %v463 = vld [vmem:[%s4 + $0x3e0] sm:$0xff]
  %v464 = vld [vmem:[%s4 + $0x3e8] sm:$0xff]
  %v465 = vld [vmem:[%s4 + $0x3f0] sm:$0xff]
  %v466 = vld [vmem:[%s4 + $0x3f8] sm:$0xff]
  %v467 = vld [vmem:[%s4 + $0x400] sm:$0xff]
  %v468 = vld [vmem:[%s4 + $0x408] sm:$0xff]
  %v469 = vld [vmem:[%s4 + $0x410] sm:$0xff]
  %v470 = vld [vmem:[%s4 + $0x418] sm:$0xff]
  %v471 = vld [vmem:[%s4 + $0x420] sm:$0xff]
  %v472 = vld [vmem:[%s4 + $0x428] sm:$0xff]
  %v473 = vld [vmem:[%s4 + $0x430] sm:$0xff]
  %v474 = vld [vmem:[%s4 + $0x438] sm:$0xff]
  %v475 = vld [vmem:[%s4 + $0x440] sm:$0xff]
  %v476 = vld [vmem:[%s4 + $0x448] sm:$0xff]
  %v477 = vld [vmem:[%s4 + $0x450] sm:$0xff]
  %v478 = vld [vmem:[%s4 + $0x458] sm:$0xff]
  %v479 = vld [vmem:[%s4 + $0x460] sm:$0xff]
  %v480 = vld [vmem:[%s4 + $0x468] sm:$0xff]
  %v481 = vld [vmem:[%s4 + $0x470] sm:$0xff]
  %v482 = vld [vmem:[%s4 + $0x478] sm:$0xff]
  %v483 = vld [vmem:[%s4 + $0x480] sm:$0xff]
  %v484 = vld [vmem:[%s4 + $0x488] sm:$0xff]
  %v485 = vld [vmem:[%s4 + $0x490] sm:$0xff]
  %v486 = vld [vmem:[%s4 + $0x498] sm:$0xff]
  %v487 = vld [vmem:[%s4 + $0x4a0] sm:$0xff]
  %v488 = vld [vmem:[%s4 + $0x4a8] sm:$0xff]
  %v489 = vld [vmem:[%s4 + $0x4b0] sm:$0xff]
  %v490 = vld [vmem:[%s4 + $0x4b8] sm:$0xff]
  %v491 = vld [vmem:[%s4 + $0x4c0] sm:$0xff]
  %v492 = vld [vmem:[%s4 + $0x4c8] sm:$0xff]
  %v493 = vld [vmem:[%s4 + $0x4d0] sm:$0xff]
  %v494 = vld [vmem:[%s4 + $0x4d8] sm:$0xff]
  %v495 = vld [vmem:[%s4 + $0x4e0] sm:$0xff]
  %v496 = vld [vmem:[%s4 + $0x4e8] sm:$0xff]
  %v497 = vld [vmem:[%s4 + $0x4f0] sm:$0xff]
  %v498 = vld [vmem:[%s4 + $0x4f8] sm:$0xff]
  %v499 = vpack.c.bf16 %v152, %v152
  %v500 = vpack.c.bf16 %v172, %v172
  %v501 = vpack.c.bf16 %v192, %v192
  %v502 = vpack.c.bf16 %v212, %v212
  %v503 = vpack.c.bf16 %v232, %v232
  %v504 = vpack.c.bf16 %v252, %v252
  %v505 = vpack.c.bf16 %v272, %v272
  %v506 = vpack.c.bf16 %v292, %v292
  %v507 = vpack.c.bf16 %v312, %v312
  %v508 = vpack.c.bf16 %v332, %v332
  %v509 = vld [vmem:[%s5] sm:$0xff]
  %v510 = vld [vmem:[%s5 + $0x8] sm:$0xff]
  %v511 = vld [vmem:[%s5 + $0x10] sm:$0xff]
  %v512 = vld [vmem:[%s5 + $0x18] sm:$0xff]
  %v513 = vld [vmem:[%s5 + $0x20] sm:$0xff]
  %v514 = vld [vmem:[%s5 + $0x28] sm:$0xff]
  %v515 = vld [vmem:[%s5 + $0x30] sm:$0xff]
  %v516 = vld [vmem:[%s5 + $0x38] sm:$0xff]
  %v517 = vld [vmem:[%s5 + $0x40] sm:$0xff]
  %v518 = vld [vmem:[%s5 + $0x48] sm:$0xff]
  %v519 = vld [vmem:[%s5 + $0x50] sm:$0xff]
  %v520 = vld [vmem:[%s5 + $0x58] sm:$0xff]
  %v521 = vld [vmem:[%s5 + $0x60] sm:$0xff]
  %v522 = vld [vmem:[%s5 + $0x68] sm:$0xff]
  %v523 = vld [vmem:[%s5 + $0x70] sm:$0xff]
  %v524 = vld [vmem:[%s5 + $0x78] sm:$0xff]
  %v525 = vld [vmem:[%s5 + $0x80] sm:$0xff]
  %v526 = vld [vmem:[%s5 + $0x88] sm:$0xff]
  %v527 = vld [vmem:[%s5 + $0x90] sm:$0xff]
  %v528 = vld [vmem:[%s5 + $0x98] sm:$0xff]
  %v529 = vld [vmem:[%s5 + $0xa0] sm:$0xff]
  %v530 = vld [vmem:[%s5 + $0xa8] sm:$0xff]
  %v531 = vld [vmem:[%s5 + $0xb0] sm:$0xff]
  %v532 = vld [vmem:[%s5 + $0xb8] sm:$0xff]
  %v533 = vld [vmem:[%s5 + $0xc0] sm:$0xff]
  %v534 = vld [vmem:[%s5 + $0xc8] sm:$0xff]
  %v535 = vld [vmem:[%s5 + $0xd0] sm:$0xff]
  %v536 = vld [vmem:[%s5 + $0xd8] sm:$0xff]
  %v537 = vld [vmem:[%s5 + $0xe0] sm:$0xff]
  %v538 = vld [vmem:[%s5 + $0xe8] sm:$0xff]
  %v539 = vld [vmem:[%s5 + $0xf0] sm:$0xff]
  %v540 = vld [vmem:[%s5 + $0xf8] sm:$0xff]
  %v541 = vld [vmem:[%s5 + $0x100] sm:$0xff]
  %v542 = vld [vmem:[%s5 + $0x108] sm:$0xff]
  %v543 = vld [vmem:[%s5 + $0x110] sm:$0xff]
  %v544 = vld [vmem:[%s5 + $0x118] sm:$0xff]
  %v545 = vld [vmem:[%s5 + $0x120] sm:$0xff]
  %v546 = vld [vmem:[%s5 + $0x128] sm:$0xff]
  %v547 = vld [vmem:[%s5 + $0x130] sm:$0xff]
  %v548 = vld [vmem:[%s5 + $0x138] sm:$0xff]
  %v549 = vld [vmem:[%s5 + $0x140] sm:$0xff]
  %v550 = vld [vmem:[%s5 + $0x148] sm:$0xff]
  %v551 = vld [vmem:[%s5 + $0x150] sm:$0xff]
  %v552 = vld [vmem:[%s5 + $0x158] sm:$0xff]
  %v553 = vld [vmem:[%s5 + $0x160] sm:$0xff]
  %v554 = vld [vmem:[%s5 + $0x168] sm:$0xff]
  %v555 = vld [vmem:[%s5 + $0x170] sm:$0xff]
  %v556 = vld [vmem:[%s5 + $0x178] sm:$0xff]
  %v557 = vld [vmem:[%s5 + $0x180] sm:$0xff]
  %v558 = vld [vmem:[%s5 + $0x188] sm:$0xff]
  %v559 = vld [vmem:[%s5 + $0x190] sm:$0xff]
  %v560 = vld [vmem:[%s5 + $0x198] sm:$0xff]
  %v561 = vld [vmem:[%s5 + $0x1a0] sm:$0xff]
  %v562 = vld [vmem:[%s5 + $0x1a8] sm:$0xff]
  %v563 = vld [vmem:[%s5 + $0x1b0] sm:$0xff]
  %v564 = vld [vmem:[%s5 + $0x1b8] sm:$0xff]
  %v565 = vld [vmem:[%s5 + $0x1c0] sm:$0xff]
  %v566 = vld [vmem:[%s5 + $0x1c8] sm:$0xff]
  %v567 = vld [vmem:[%s5 + $0x1d0] sm:$0xff]
  %v568 = vld [vmem:[%s5 + $0x1d8] sm:$0xff]
  %v569 = vld [vmem:[%s5 + $0x1e0] sm:$0xff]
  %v570 = vld [vmem:[%s5 + $0x1e8] sm:$0xff]
  %v571 = vld [vmem:[%s5 + $0x1f0] sm:$0xff]
  %v572 = vld [vmem:[%s5 + $0x1f8] sm:$0xff]
  %v573 = vld [vmem:[%s5 + $0x200] sm:$0xff]
  %v574 = vld [vmem:[%s5 + $0x208] sm:$0xff]
  %v575 = vld [vmem:[%s5 + $0x210] sm:$0xff]
  %v576 = vld [vmem:[%s5 + $0x218] sm:$0xff]
  %v577 = vld [vmem:[%s5 + $0x220] sm:$0xff]
  %v578 = vld [vmem:[%s5 + $0x228] sm:$0xff]
  %v579 = vld [vmem:[%s5 + $0x230] sm:$0xff]
  %v580 = vld [vmem:[%s5 + $0x238] sm:$0xff]
  %v581 = vld [vmem:[%s5 + $0x240] sm:$0xff]
  %v582 = vld [vmem:[%s5 + $0x248] sm:$0xff]
  %v583 = vld [vmem:[%s5 + $0x250] sm:$0xff]
  %v584 = vld [vmem:[%s5 + $0x258] sm:$0xff]
  %v585 = vld [vmem:[%s5 + $0x260] sm:$0xff]
  %v586 = vld [vmem:[%s5 + $0x268] sm:$0xff]
  %v587 = vld [vmem:[%s5 + $0x270] sm:$0xff]
  %v588 = vld [vmem:[%s5 + $0x278] sm:$0xff]
  %v589 = vld [vmem:[%s5 + $0x280] sm:$0xff]
  %v590 = vld [vmem:[%s5 + $0x288] sm:$0xff]
  %v591 = vld [vmem:[%s5 + $0x290] sm:$0xff]
  %v592 = vld [vmem:[%s5 + $0x298] sm:$0xff]
  %v593 = vld [vmem:[%s5 + $0x2a0] sm:$0xff]
  %v594 = vld [vmem:[%s5 + $0x2a8] sm:$0xff]
  %v595 = vld [vmem:[%s5 + $0x2b0] sm:$0xff]
  %v596 = vld [vmem:[%s5 + $0x2b8] sm:$0xff]
  %v597 = vld [vmem:[%s5 + $0x2c0] sm:$0xff]
  %v598 = vld [vmem:[%s5 + $0x2c8] sm:$0xff]
  %v599 = vld [vmem:[%s5 + $0x2d0] sm:$0xff]
  %v600 = vld [vmem:[%s5 + $0x2d8] sm:$0xff]
  %v601 = vld [vmem:[%s5 + $0x2e0] sm:$0xff]
  %v602 = vld [vmem:[%s5 + $0x2e8] sm:$0xff]
  %v603 = vld [vmem:[%s5 + $0x2f0] sm:$0xff]
  %v604 = vld [vmem:[%s5 + $0x2f8] sm:$0xff]
  %v605 = vld [vmem:[%s5 + $0x300] sm:$0xff]
  %v606 = vld [vmem:[%s5 + $0x308] sm:$0xff]
  %v607 = vld [vmem:[%s5 + $0x310] sm:$0xff]
  %v608 = vld [vmem:[%s5 + $0x318] sm:$0xff]
  %v609 = vld [vmem:[%s5 + $0x320] sm:$0xff]
  %v610 = vld [vmem:[%s5 + $0x328] sm:$0xff]
  %v611 = vld [vmem:[%s5 + $0x330] sm:$0xff]
  %v612 = vld [vmem:[%s5 + $0x338] sm:$0xff]
  %v613 = vld [vmem:[%s5 + $0x340] sm:$0xff]
  %v614 = vld [vmem:[%s5 + $0x348] sm:$0xff]
  %v615 = vld [vmem:[%s5 + $0x350] sm:$0xff]
  %v616 = vld [vmem:[%s5 + $0x358] sm:$0xff]
  %v617 = vld [vmem:[%s5 + $0x360] sm:$0xff]
  %v618 = vld [vmem:[%s5 + $0x368] sm:$0xff]
  %v619 = vld [vmem:[%s5 + $0x370] sm:$0xff]
  %v620 = vld [vmem:[%s5 + $0x378] sm:$0xff]
  %v621 = vld [vmem:[%s5 + $0x380] sm:$0xff]
  %v622 = vld [vmem:[%s5 + $0x388] sm:$0xff]
  %v623 = vld [vmem:[%s5 + $0x390] sm:$0xff]
  %v624 = vld [vmem:[%s5 + $0x398] sm:$0xff]
  %v625 = vld [vmem:[%s5 + $0x3a0] sm:$0xff]
  %v626 = vld [vmem:[%s5 + $0x3a8] sm:$0xff]
  %v627 = vld [vmem:[%s5 + $0x3b0] sm:$0xff]
  %v628 = vld [vmem:[%s5 + $0x3b8] sm:$0xff]
  %v629 = vld [vmem:[%s5 + $0x3c0] sm:$0xff]
  %v630 = vld [vmem:[%s5 + $0x3c8] sm:$0xff]
  %v631 = vld [vmem:[%s5 + $0x3d0] sm:$0xff]
  %v632 = vld [vmem:[%s5 + $0x3d8] sm:$0xff]
  %v633 = vld [vmem:[%s5 + $0x3e0] sm:$0xff]
  %v634 = vld [vmem:[%s5 + $0x3e8] sm:$0xff]
  %v635 = vld [vmem:[%s5 + $0x3f0] sm:$0xff]
  %v636 = vld [vmem:[%s5 + $0x3f8] sm:$0xff]
  %v637 = vld [vmem:[%s5 + $0x400] sm:$0xff]
  %v638 = vld [vmem:[%s5 + $0x408] sm:$0xff]
  %v639 = vld [vmem:[%s5 + $0x410] sm:$0xff]
  %v640 = vld [vmem:[%s5 + $0x418] sm:$0xff]
  %v641 = vld [vmem:[%s5 + $0x420] sm:$0xff]
  %v642 = vld [vmem:[%s5 + $0x428] sm:$0xff]
  %v643 = vld [vmem:[%s5 + $0x430] sm:$0xff]
  %v644 = vld [vmem:[%s5 + $0x438] sm:$0xff]
  %v645 = vld [vmem:[%s5 + $0x440] sm:$0xff]
  %v646 = vld [vmem:[%s5 + $0x448] sm:$0xff]
  %v647 = vld [vmem:[%s5 + $0x450] sm:$0xff]
  %v648 = vld [vmem:[%s5 + $0x458] sm:$0xff]
  %v649 = vld [vmem:[%s5 + $0x460] sm:$0xff]
  %v650 = vld [vmem:[%s5 + $0x468] sm:$0xff]
  %v651 = vld [vmem:[%s5 + $0x470] sm:$0xff]
  %v652 = vld [vmem:[%s5 + $0x478] sm:$0xff]
  %v653 = vld [vmem:[%s5 + $0x480] sm:$0xff]
  %v654 = vld [vmem:[%s5 + $0x488] sm:$0xff]
  %v655 = vld [vmem:[%s5 + $0x490] sm:$0xff]
  %v656 = vld [vmem:[%s5 + $0x498] sm:$0xff]
  %v657 = vld [vmem:[%s5 + $0x4a0] sm:$0xff]
  %v658 = vld [vmem:[%s5 + $0x4a8] sm:$0xff]
  %v659 = vld [vmem:[%s5 + $0x4b0] sm:$0xff]
  %v660 = vld [vmem:[%s5 + $0x4b8] sm:$0xff]
  %v661 = vld [vmem:[%s5 + $0x4c0] sm:$0xff]
  %v662 = vld [vmem:[%s5 + $0x4c8] sm:$0xff]
  %v663 = vld [vmem:[%s5 + $0x4d0] sm:$0xff]
  %v664 = vld [vmem:[%s5 + $0x4d8] sm:$0xff]
  %v665 = vld [vmem:[%s5 + $0x4e0] sm:$0xff]
  %v666 = vld [vmem:[%s5 + $0x4e8] sm:$0xff]
  %v667 = vld [vmem:[%s5 + $0x4f0] sm:$0xff]
  %v668 = vld [vmem:[%s5 + $0x4f8] sm:$0xff]
  %v829 = vunpack.c.l.b16 %v509
  %v830 = vunpack.c.h.b16 %v509
  %v831 = vunpack.c.l.b16 %v510
  %v832 = vunpack.c.h.b16 %v510
  %v833 = vunpack.c.l.b16 %v511
  %v834 = vunpack.c.h.b16 %v511
  %v835 = vunpack.c.l.b16 %v512
  %v836 = vunpack.c.h.b16 %v512
  %v837 = vunpack.c.l.b16 %v513
  %v838 = vunpack.c.h.b16 %v513
  %v839 = vunpack.c.l.b16 %v514
  %v840 = vunpack.c.h.b16 %v514
  %v841 = vunpack.c.l.b16 %v515
  %v842 = vunpack.c.h.b16 %v515
  %v843 = vunpack.c.l.b16 %v516
  %v844 = vunpack.c.h.b16 %v516
  %v845 = vunpack.c.l.b16 %v517
  %v846 = vunpack.c.h.b16 %v517
  %v847 = vunpack.c.l.b16 %v518
  %v848 = vunpack.c.h.b16 %v518
  %v849 = vunpack.c.l.b16 %v519
  %v850 = vunpack.c.h.b16 %v519
  %v851 = vunpack.c.l.b16 %v520
  %v852 = vunpack.c.h.b16 %v520
  %v853 = vunpack.c.l.b16 %v521
  %v854 = vunpack.c.h.b16 %v521
  %v855 = vunpack.c.l.b16 %v522
  %v856 = vunpack.c.h.b16 %v522
  %v857 = vunpack.c.l.b16 %v523
  %v858 = vunpack.c.h.b16 %v523
  %v859 = vunpack.c.l.b16 %v524
  %v860 = vunpack.c.h.b16 %v524
  %v861 = vunpack.c.l.b16 %v525
  %v862 = vunpack.c.h.b16 %v525
  %v863 = vunpack.c.l.b16 %v526
  %v864 = vunpack.c.h.b16 %v526
  %v865 = vunpack.c.l.b16 %v527
  %v866 = vunpack.c.h.b16 %v527
  %v867 = vunpack.c.l.b16 %v528
  %v868 = vunpack.c.h.b16 %v528
  %v869 = vunpack.c.l.b16 %v529
  %v870 = vunpack.c.h.b16 %v529
  %v871 = vunpack.c.l.b16 %v530
  %v872 = vunpack.c.h.b16 %v530
  %v873 = vunpack.c.l.b16 %v531
  %v874 = vunpack.c.h.b16 %v531
  %v875 = vunpack.c.l.b16 %v532
  %v876 = vunpack.c.h.b16 %v532
  %v877 = vunpack.c.l.b16 %v533
  %v878 = vunpack.c.h.b16 %v533
  %v879 = vunpack.c.l.b16 %v534
  %v880 = vunpack.c.h.b16 %v534
  %v881 = vunpack.c.l.b16 %v535
  %v882 = vunpack.c.h.b16 %v535
  %v883 = vunpack.c.l.b16 %v536
  %v884 = vunpack.c.h.b16 %v536
  %v885 = vunpack.c.l.b16 %v537
  %v886 = vunpack.c.h.b16 %v537
  %v887 = vunpack.c.l.b16 %v538
  %v888 = vunpack.c.h.b16 %v538
  %v889 = vunpack.c.l.b16 %v539
  %v890 = vunpack.c.h.b16 %v539
  %v891 = vunpack.c.l.b16 %v540
  %v892 = vunpack.c.h.b16 %v540
  %v893 = vunpack.c.l.b16 %v541
  %v894 = vunpack.c.h.b16 %v541
  %v895 = vunpack.c.l.b16 %v542
  %v896 = vunpack.c.h.b16 %v542
  %v897 = vunpack.c.l.b16 %v543
  %v898 = vunpack.c.h.b16 %v543
  %v899 = vunpack.c.l.b16 %v544
  %v900 = vunpack.c.h.b16 %v544
  %v901 = vunpack.c.l.b16 %v545
  %v902 = vunpack.c.h.b16 %v545
  %v903 = vunpack.c.l.b16 %v546
  %v904 = vunpack.c.h.b16 %v546
  %v905 = vunpack.c.l.b16 %v547
  %v906 = vunpack.c.h.b16 %v547
  %v907 = vunpack.c.l.b16 %v548
  %v908 = vunpack.c.h.b16 %v548
  %v909 = vunpack.c.l.b16 %v549
  %v910 = vunpack.c.h.b16 %v549
  %v911 = vunpack.c.l.b16 %v550
  %v912 = vunpack.c.h.b16 %v550
  %v913 = vunpack.c.l.b16 %v551
  %v914 = vunpack.c.h.b16 %v551
  %v915 = vunpack.c.l.b16 %v552
  %v916 = vunpack.c.h.b16 %v552
  %v917 = vunpack.c.l.b16 %v553
  %v918 = vunpack.c.h.b16 %v553
  %v919 = vunpack.c.l.b16 %v554
  %v920 = vunpack.c.h.b16 %v554
  %v921 = vunpack.c.l.b16 %v555
  %v922 = vunpack.c.h.b16 %v555
  %v923 = vunpack.c.l.b16 %v556
  %v924 = vunpack.c.h.b16 %v556
  %v925 = vunpack.c.l.b16 %v557
  %v926 = vunpack.c.h.b16 %v557
  %v927 = vunpack.c.l.b16 %v558
  %v928 = vunpack.c.h.b16 %v558
  %v929 = vunpack.c.l.b16 %v559
  %v930 = vunpack.c.h.b16 %v559
  %v931 = vunpack.c.l.b16 %v560
  %v932 = vunpack.c.h.b16 %v560
  %v933 = vunpack.c.l.b16 %v561
  %v934 = vunpack.c.h.b16 %v561
  %v935 = vunpack.c.l.b16 %v562
  %v936 = vunpack.c.h.b16 %v562
  %v937 = vunpack.c.l.b16 %v563
  %v938 = vunpack.c.h.b16 %v563
  %v939 = vunpack.c.l.b16 %v564
  %v940 = vunpack.c.h.b16 %v564
  %v941 = vunpack.c.l.b16 %v565
  %v942 = vunpack.c.h.b16 %v565
  %v943 = vunpack.c.l.b16 %v566
  %v944 = vunpack.c.h.b16 %v566
  %v945 = vunpack.c.l.b16 %v567
  %v946 = vunpack.c.h.b16 %v567
  %v947 = vunpack.c.l.b16 %v568
  %v948 = vunpack.c.h.b16 %v568
  %v949 = vunpack.c.l.b16 %v569
  %v950 = vunpack.c.h.b16 %v569
  %v951 = vunpack.c.l.b16 %v570
  %v952 = vunpack.c.h.b16 %v570
  %v953 = vunpack.c.l.b16 %v571
  %v954 = vunpack.c.h.b16 %v571
  %v955 = vunpack.c.l.b16 %v572
  %v956 = vunpack.c.h.b16 %v572
  %v957 = vunpack.c.l.b16 %v573
  %v958 = vunpack.c.h.b16 %v573
  %v959 = vunpack.c.l.b16 %v574
  %v960 = vunpack.c.h.b16 %v574
  %v961 = vunpack.c.l.b16 %v575
  %v962 = vunpack.c.h.b16 %v575
  %v963 = vunpack.c.l.b16 %v576
  %v964 = vunpack.c.h.b16 %v576
  %v965 = vunpack.c.l.b16 %v577
  %v966 = vunpack.c.h.b16 %v577
  %v967 = vunpack.c.l.b16 %v578
  %v968 = vunpack.c.h.b16 %v578
  %v969 = vunpack.c.l.b16 %v579
  %v970 = vunpack.c.h.b16 %v579
  %v971 = vunpack.c.l.b16 %v580
  %v972 = vunpack.c.h.b16 %v580
  %v973 = vunpack.c.l.b16 %v581
  %v974 = vunpack.c.h.b16 %v581
  %v975 = vunpack.c.l.b16 %v582
  %v976 = vunpack.c.h.b16 %v582
  %v977 = vunpack.c.l.b16 %v583
  %v978 = vunpack.c.h.b16 %v583
  %v979 = vunpack.c.l.b16 %v584
  %v980 = vunpack.c.h.b16 %v584
  %v981 = vunpack.c.l.b16 %v585
  %v982 = vunpack.c.h.b16 %v585
  %v983 = vunpack.c.l.b16 %v586
  %v984 = vunpack.c.h.b16 %v586
  %v985 = vunpack.c.l.b16 %v587
  %v986 = vunpack.c.h.b16 %v587
  %v987 = vunpack.c.l.b16 %v588
  %v988 = vunpack.c.h.b16 %v588
  %v989 = vunpack.c.l.b16 %v589
  %v990 = vunpack.c.h.b16 %v589
  %v991 = vunpack.c.l.b16 %v590
  %v992 = vunpack.c.h.b16 %v590
  %v993 = vunpack.c.l.b16 %v591
  %v994 = vunpack.c.h.b16 %v591
  %v995 = vunpack.c.l.b16 %v592
  %v996 = vunpack.c.h.b16 %v592
  %v997 = vunpack.c.l.b16 %v593
  %v998 = vunpack.c.h.b16 %v593
  %v999 = vunpack.c.l.b16 %v594
  %v1000 = vunpack.c.h.b16 %v594
  %v1001 = vunpack.c.l.b16 %v595
  %v1002 = vunpack.c.h.b16 %v595
  %v1003 = vunpack.c.l.b16 %v596
  %v1004 = vunpack.c.h.b16 %v596
  %v1005 = vunpack.c.l.b16 %v597
  %v1006 = vunpack.c.h.b16 %v597
  %v1007 = vunpack.c.l.b16 %v598
  %v1008 = vunpack.c.h.b16 %v598
  %v1009 = vunpack.c.l.b16 %v599
  %v1010 = vunpack.c.h.b16 %v599
  %v1011 = vunpack.c.l.b16 %v600
  %v1012 = vunpack.c.h.b16 %v600
  %v1013 = vunpack.c.l.b16 %v601
  %v1014 = vunpack.c.h.b16 %v601
  %v1015 = vunpack.c.l.b16 %v602
  %v1016 = vunpack.c.h.b16 %v602
  %v1017 = vunpack.c.l.b16 %v603
  %v1018 = vunpack.c.h.b16 %v603
  %v1019 = vunpack.c.l.b16 %v604
  %v1020 = vunpack.c.h.b16 %v604
  %v1021 = vunpack.c.l.b16 %v605
  %v1022 = vunpack.c.h.b16 %v605
  %v1023 = vunpack.c.l.b16 %v606
  %v1024 = vunpack.c.h.b16 %v606
  %v1025 = vunpack.c.l.b16 %v607
  %v1026 = vunpack.c.h.b16 %v607
  %v1027 = vunpack.c.l.b16 %v608
  %v1028 = vunpack.c.h.b16 %v608
  %v1029 = vunpack.c.l.b16 %v609
  %v1030 = vunpack.c.h.b16 %v609
  %v1031 = vunpack.c.l.b16 %v610
  %v1032 = vunpack.c.h.b16 %v610
  %v1033 = vunpack.c.l.b16 %v611
  %v1034 = vunpack.c.h.b16 %v611
  %v1035 = vunpack.c.l.b16 %v612
  %v1036 = vunpack.c.h.b16 %v612
  %v1037 = vunpack.c.l.b16 %v613
  %v1038 = vunpack.c.h.b16 %v613
  %v1039 = vunpack.c.l.b16 %v614
  %v1040 = vunpack.c.h.b16 %v614
  %v1041 = vunpack.c.l.b16 %v615
  %v1042 = vunpack.c.h.b16 %v615
  %v1043 = vunpack.c.l.b16 %v616
  %v1044 = vunpack.c.h.b16 %v616
  %v1045 = vunpack.c.l.b16 %v617
  %v1046 = vunpack.c.h.b16 %v617
  %v1047 = vunpack.c.l.b16 %v618
  %v1048 = vunpack.c.h.b16 %v618
  %v1049 = vunpack.c.l.b16 %v619
  %v1050 = vunpack.c.h.b16 %v619
  %v1051 = vunpack.c.l.b16 %v620
  %v1052 = vunpack.c.h.b16 %v620
  %v1053 = vunpack.c.l.b16 %v621
  %v1054 = vunpack.c.h.b16 %v621
  %v1055 = vunpack.c.l.b16 %v622
  %v1056 = vunpack.c.h.b16 %v622
  %v1057 = vunpack.c.l.b16 %v623
  %v1058 = vunpack.c.h.b16 %v623
  %v1059 = vunpack.c.l.b16 %v624
  %v1060 = vunpack.c.h.b16 %v624
  %v1061 = vunpack.c.l.b16 %v625
  %v1062 = vunpack.c.h.b16 %v625
  %v1063 = vunpack.c.l.b16 %v626
  %v1064 = vunpack.c.h.b16 %v626
  %v1065 = vunpack.c.l.b16 %v627
  %v1066 = vunpack.c.h.b16 %v627
  %v1067 = vunpack.c.l.b16 %v628
  %v1068 = vunpack.c.h.b16 %v628
  %v1069 = vunpack.c.l.b16 %v629
  %v1070 = vunpack.c.h.b16 %v629
  %v1071 = vunpack.c.l.b16 %v630
  %v1072 = vunpack.c.h.b16 %v630
  %v1073 = vunpack.c.l.b16 %v631
  %v1074 = vunpack.c.h.b16 %v631
  %v1075 = vunpack.c.l.b16 %v632
  %v1076 = vunpack.c.h.b16 %v632
  %v1077 = vunpack.c.l.b16 %v633
  %v1078 = vunpack.c.h.b16 %v633
  %v1079 = vunpack.c.l.b16 %v634
  %v1080 = vunpack.c.h.b16 %v634
  %v1081 = vunpack.c.l.b16 %v635
  %v1082 = vunpack.c.h.b16 %v635
  %v1083 = vunpack.c.l.b16 %v636
  %v1084 = vunpack.c.h.b16 %v636
  %v1085 = vunpack.c.l.b16 %v637
  %v1086 = vunpack.c.h.b16 %v637
  %v1087 = vunpack.c.l.b16 %v638
  %v1088 = vunpack.c.h.b16 %v638
  %v1089 = vunpack.c.l.b16 %v639
  %v1090 = vunpack.c.h.b16 %v639
  %v1091 = vunpack.c.l.b16 %v640
  %v1092 = vunpack.c.h.b16 %v640
  %v1093 = vunpack.c.l.b16 %v641
  %v1094 = vunpack.c.h.b16 %v641
  %v1095 = vunpack.c.l.b16 %v642
  %v1096 = vunpack.c.h.b16 %v642
  %v1097 = vunpack.c.l.b16 %v643
  %v1098 = vunpack.c.h.b16 %v643
  %v1099 = vunpack.c.l.b16 %v644
  %v1100 = vunpack.c.h.b16 %v644
  %v1101 = vunpack.c.l.b16 %v645
  %v1102 = vunpack.c.h.b16 %v645
  %v1103 = vunpack.c.l.b16 %v646
  %v1104 = vunpack.c.h.b16 %v646
  %v1105 = vunpack.c.l.b16 %v647
  %v1106 = vunpack.c.h.b16 %v647
  %v1107 = vunpack.c.l.b16 %v648
  %v1108 = vunpack.c.h.b16 %v648
  %v1109 = vunpack.c.l.b16 %v649
  %v1110 = vunpack.c.h.b16 %v649
  %v1111 = vunpack.c.l.b16 %v650
  %v1112 = vunpack.c.h.b16 %v650
  %v1113 = vunpack.c.l.b16 %v651
  %v1114 = vunpack.c.h.b16 %v651
  %v1115 = vunpack.c.l.b16 %v652
  %v1116 = vunpack.c.h.b16 %v652
  %v1117 = vunpack.c.l.b16 %v653
  %v1118 = vunpack.c.h.b16 %v653
  %v1119 = vunpack.c.l.b16 %v654
  %v1120 = vunpack.c.h.b16 %v654
  %v1121 = vunpack.c.l.b16 %v655
  %v1122 = vunpack.c.h.b16 %v655
  %v1123 = vunpack.c.l.b16 %v656
  %v1124 = vunpack.c.h.b16 %v656
  %v1125 = vunpack.c.l.b16 %v657
  %v1126 = vunpack.c.h.b16 %v657
  %v1127 = vunpack.c.l.b16 %v658
  %v1128 = vunpack.c.h.b16 %v658
  %v1129 = vunpack.c.l.b16 %v659
  %v1130 = vunpack.c.h.b16 %v659
  %v1131 = vunpack.c.l.b16 %v660
  %v1132 = vunpack.c.h.b16 %v660
  %v1133 = vunpack.c.l.b16 %v661
  %v1134 = vunpack.c.h.b16 %v661
  %v1135 = vunpack.c.l.b16 %v662
  %v1136 = vunpack.c.h.b16 %v662
  %v1137 = vunpack.c.l.b16 %v663
  %v1138 = vunpack.c.h.b16 %v663
  %v1139 = vunpack.c.l.b16 %v664
  %v1140 = vunpack.c.h.b16 %v664
  %v1141 = vunpack.c.l.b16 %v665
  %v1142 = vunpack.c.h.b16 %v665
  %v1143 = vunpack.c.l.b16 %v666
  %v1144 = vunpack.c.h.b16 %v666
  %v1145 = vunpack.c.l.b16 %v667
  %v1146 = vunpack.c.h.b16 %v667
  %v1147 = vunpack.c.l.b16 %v668
  %v1148 = vunpack.c.h.b16 %v668
  %v1149 = vpack.c.b16 %v831, %v829
  %v1150 = vpack.c.b16 %v832, %v830
  %v1151 = vpack.c.b16 %v835, %v833
  %v1152 = vpack.c.b16 %v836, %v834
  %v1153 = vpack.c.b16 %v839, %v837
  %v1154 = vpack.c.b16 %v840, %v838
  %v1155 = vpack.c.b16 %v843, %v841
  %v1156 = vpack.c.b16 %v844, %v842
  %v1157 = vpack.c.b16 %v847, %v845
  %v1158 = vpack.c.b16 %v848, %v846
  %v1159 = vpack.c.b16 %v851, %v849
  %v1160 = vpack.c.b16 %v852, %v850
  %v1161 = vpack.c.b16 %v855, %v853
  %v1162 = vpack.c.b16 %v856, %v854
  %v1163 = vpack.c.b16 %v859, %v857
  %v1164 = vpack.c.b16 %v860, %v858
  %v1165 = vpack.c.b16 %v863, %v861
  %v1166 = vpack.c.b16 %v864, %v862
  %v1167 = vpack.c.b16 %v867, %v865
  %v1168 = vpack.c.b16 %v868, %v866
  %v1169 = vpack.c.b16 %v871, %v869
  %v1170 = vpack.c.b16 %v872, %v870
  %v1171 = vpack.c.b16 %v875, %v873
  %v1172 = vpack.c.b16 %v876, %v874
  %v1173 = vpack.c.b16 %v879, %v877
  %v1174 = vpack.c.b16 %v880, %v878
  %v1175 = vpack.c.b16 %v883, %v881
  %v1176 = vpack.c.b16 %v884, %v882
  %v1177 = vpack.c.b16 %v887, %v885
  %v1178 = vpack.c.b16 %v888, %v886
  %v1179 = vpack.c.b16 %v891, %v889
  %v1180 = vpack.c.b16 %v892, %v890
  %v1181 = vpack.c.b16 %v895, %v893
  %v1182 = vpack.c.b16 %v896, %v894
  %v1183 = vpack.c.b16 %v899, %v897
  %v1184 = vpack.c.b16 %v900, %v898
  %v1185 = vpack.c.b16 %v903, %v901
  %v1186 = vpack.c.b16 %v904, %v902
  %v1187 = vpack.c.b16 %v907, %v905
  %v1188 = vpack.c.b16 %v908, %v906
  %v1189 = vpack.c.b16 %v911, %v909
  %v1190 = vpack.c.b16 %v912, %v910
  %v1191 = vpack.c.b16 %v915, %v913
  %v1192 = vpack.c.b16 %v916, %v914
  %v1193 = vpack.c.b16 %v919, %v917
  %v1194 = vpack.c.b16 %v920, %v918
  %v1195 = vpack.c.b16 %v923, %v921
  %v1196 = vpack.c.b16 %v924, %v922
  %v1197 = vpack.c.b16 %v927, %v925
  %v1198 = vpack.c.b16 %v928, %v926
  %v1199 = vpack.c.b16 %v931, %v929
  %v1200 = vpack.c.b16 %v932, %v930
  %v1201 = vpack.c.b16 %v935, %v933
  %v1202 = vpack.c.b16 %v936, %v934
  %v1203 = vpack.c.b16 %v939, %v937
  %v1204 = vpack.c.b16 %v940, %v938
  %v1205 = vpack.c.b16 %v943, %v941
  %v1206 = vpack.c.b16 %v944, %v942
  %v1207 = vpack.c.b16 %v947, %v945
  %v1208 = vpack.c.b16 %v948, %v946
  %v1209 = vpack.c.b16 %v951, %v949
  %v1210 = vpack.c.b16 %v952, %v950
  %v1211 = vpack.c.b16 %v955, %v953
  %v1212 = vpack.c.b16 %v956, %v954
  %v1213 = vpack.c.b16 %v959, %v957
  %v1214 = vpack.c.b16 %v960, %v958
  %v1215 = vpack.c.b16 %v963, %v961
  %v1216 = vpack.c.b16 %v964, %v962
  %v1217 = vpack.c.b16 %v967, %v965
  %v1218 = vpack.c.b16 %v968, %v966
  %v1219 = vpack.c.b16 %v971, %v969
  %v1220 = vpack.c.b16 %v972, %v970
  %v1221 = vpack.c.b16 %v975, %v973
  %v1222 = vpack.c.b16 %v976, %v974
  %v1223 = vpack.c.b16 %v979, %v977
  %v1224 = vpack.c.b16 %v980, %v978
  %v1225 = vpack.c.b16 %v983, %v981
  %v1226 = vpack.c.b16 %v984, %v982
  %v1227 = vpack.c.b16 %v987, %v985
  %v1228 = vpack.c.b16 %v988, %v986
  %v1229 = vpack.c.b16 %v991, %v989
  %v1230 = vpack.c.b16 %v992, %v990
  %v1231 = vpack.c.b16 %v995, %v993
  %v1232 = vpack.c.b16 %v996, %v994
  %v1233 = vpack.c.b16 %v999, %v997
  %v1234 = vpack.c.b16 %v1000, %v998
  %v1235 = vpack.c.b16 %v1003, %v1001
  %v1236 = vpack.c.b16 %v1004, %v1002
  %v1237 = vpack.c.b16 %v1007, %v1005
  %v1238 = vpack.c.b16 %v1008, %v1006
  %v1239 = vpack.c.b16 %v1011, %v1009
  %v1240 = vpack.c.b16 %v1012, %v1010
  %v1241 = vpack.c.b16 %v1015, %v1013
  %v1242 = vpack.c.b16 %v1016, %v1014
  %v1243 = vpack.c.b16 %v1019, %v1017
  %v1244 = vpack.c.b16 %v1020, %v1018
  %v1245 = vpack.c.b16 %v1023, %v1021
  %v1246 = vpack.c.b16 %v1024, %v1022
  %v1247 = vpack.c.b16 %v1027, %v1025
  %v1248 = vpack.c.b16 %v1028, %v1026
  %v1249 = vpack.c.b16 %v1031, %v1029
  %v1250 = vpack.c.b16 %v1032, %v1030
  %v1251 = vpack.c.b16 %v1035, %v1033
  %v1252 = vpack.c.b16 %v1036, %v1034
  %v1253 = vpack.c.b16 %v1039, %v1037
  %v1254 = vpack.c.b16 %v1040, %v1038
  %v1255 = vpack.c.b16 %v1043, %v1041
  %v1256 = vpack.c.b16 %v1044, %v1042
  %v1257 = vpack.c.b16 %v1047, %v1045
  %v1258 = vpack.c.b16 %v1048, %v1046
  %v1259 = vpack.c.b16 %v1051, %v1049
  %v1260 = vpack.c.b16 %v1052, %v1050
  %v1261 = vpack.c.b16 %v1055, %v1053
  %v1262 = vpack.c.b16 %v1056, %v1054
  %v1263 = vpack.c.b16 %v1059, %v1057
  %v1264 = vpack.c.b16 %v1060, %v1058
  %v1265 = vpack.c.b16 %v1063, %v1061
  %v1266 = vpack.c.b16 %v1064, %v1062
  %v1267 = vpack.c.b16 %v1067, %v1065
  %v1268 = vpack.c.b16 %v1068, %v1066
  %v1269 = vpack.c.b16 %v1071, %v1069
  %v1270 = vpack.c.b16 %v1072, %v1070
  %v1271 = vpack.c.b16 %v1075, %v1073
  %v1272 = vpack.c.b16 %v1076, %v1074
  %v1273 = vpack.c.b16 %v1079, %v1077
  %v1274 = vpack.c.b16 %v1080, %v1078
  %v1275 = vpack.c.b16 %v1083, %v1081
  %v1276 = vpack.c.b16 %v1084, %v1082
  %v1277 = vpack.c.b16 %v1087, %v1085
  %v1278 = vpack.c.b16 %v1088, %v1086
  %v1279 = vpack.c.b16 %v1091, %v1089
  %v1280 = vpack.c.b16 %v1092, %v1090
  %v1281 = vpack.c.b16 %v1095, %v1093
  %v1282 = vpack.c.b16 %v1096, %v1094
  %v1283 = vpack.c.b16 %v1099, %v1097
  %v1284 = vpack.c.b16 %v1100, %v1098
  %v1285 = vpack.c.b16 %v1103, %v1101
  %v1286 = vpack.c.b16 %v1104, %v1102
  %v1287 = vpack.c.b16 %v1107, %v1105
  %v1288 = vpack.c.b16 %v1108, %v1106
  %v1289 = vpack.c.b16 %v1111, %v1109
  %v1290 = vpack.c.b16 %v1112, %v1110
  %v1291 = vpack.c.b16 %v1115, %v1113
  %v1292 = vpack.c.b16 %v1116, %v1114
  %v1293 = vpack.c.b16 %v1119, %v1117
  %v1294 = vpack.c.b16 %v1120, %v1118
  %v1295 = vpack.c.b16 %v1123, %v1121
  %v1296 = vpack.c.b16 %v1124, %v1122
  %v1297 = vpack.c.b16 %v1127, %v1125
  %v1298 = vpack.c.b16 %v1128, %v1126
  %v1299 = vpack.c.b16 %v1131, %v1129
  %v1300 = vpack.c.b16 %v1132, %v1130
  %v1301 = vpack.c.b16 %v1135, %v1133
  %v1302 = vpack.c.b16 %v1136, %v1134
  %v1303 = vpack.c.b16 %v1139, %v1137
  %v1304 = vpack.c.b16 %v1140, %v1138
  %v1305 = vpack.c.b16 %v1143, %v1141
  %v1306 = vpack.c.b16 %v1144, %v1142
  %v1307 = vpack.c.b16 %v1147, %v1145
  %v1308 = vpack.c.b16 %v1148, %v1146
  %1469 = vmatpush.bf16.msra.mxu0 %v1163
  %1470 = vmatpush.bf16.msra.mxu0 %v1161
  %1471 = vmatpush.bf16.msra.mxu0 %v1159
  %1472 = vmatpush.bf16.msra.mxu0 %v1157
  %1473 = vmatpush.bf16.msra.mxu0 %v1155
  %1474 = vmatpush.bf16.msra.mxu0 %v1153
  %1475 = vmatpush.bf16.msra.mxu0 %v1151
  %1476 = vmatpush.bf16.msra.mxu0 %v1149
  %1477 = vmatmul.bf16.gmra.mxu0 %v499
  %v1478 = vpop.f32.mrf.mxu0
  %v1479 = vadd.f32 0.0, %v1478
  %v1480 = vpop.f32.mrf.mxu0
  %1481 = vdwg.mxu0
  %1482 = vmatpush.bf16.msra.mxu0 %v1179
  %1483 = vmatpush.bf16.msra.mxu0 %v1177
  %1484 = vmatpush.bf16.msra.mxu0 %v1175
  %1485 = vmatpush.bf16.msra.mxu0 %v1173
  %1486 = vmatpush.bf16.msra.mxu0 %v1171
  %1487 = vmatpush.bf16.msra.mxu0 %v1169
  %1488 = vmatpush.bf16.msra.mxu0 %v1167
  %1489 = vmatpush.bf16.msra.mxu0 %v1165
  %1490 = vmatmul.bf16.gmra.mxu0 %v500
  %v1491 = vpop.f32.mrf.mxu0
  %v1492 = vadd.f32 %v1479, %v1491
  %v1493 = vpop.f32.mrf.mxu0
  %1494 = vdwg.mxu0
  %1495 = vmatpush.bf16.msra.mxu0 %v1195
  %1496 = vmatpush.bf16.msra.mxu0 %v1193
  %1497 = vmatpush.bf16.msra.mxu0 %v1191
  %1498 = vmatpush.bf16.msra.mxu0 %v1189
  %1499 = vmatpush.bf16.msra.mxu0 %v1187
  %1500 = vmatpush.bf16.msra.mxu0 %v1185
  %1501 = vmatpush.bf16.msra.mxu0 %v1183
  %1502 = vmatpush.bf16.msra.mxu0 %v1181
  %1503 = vmatmul.bf16.gmra.mxu0 %v501
  %v1504 = vpop.f32.mrf.mxu0
  %v1505 = vadd.f32 %v1492, %v1504
  %v1506 = vpop.f32.mrf.mxu0
  %1507 = vdwg.mxu0
  %1508 = vmatpush.bf16.msra.mxu0 %v1211
  %1509 = vmatpush.bf16.msra.mxu0 %v1209
  %1510 = vmatpush.bf16.msra.mxu0 %v1207
  %1511 = vmatpush.bf16.msra.mxu0 %v1205
  %1512 = vmatpush.bf16.msra.mxu0 %v1203
  %1513 = vmatpush.bf16.msra.mxu0 %v1201
  %1514 = vmatpush.bf16.msra.mxu0 %v1199
  %1515 = vmatpush.bf16.msra.mxu0 %v1197
  %1516 = vmatmul.bf16.gmra.mxu0 %v502
  %v1517 = vpop.f32.mrf.mxu0
  %v1518 = vadd.f32 %v1505, %v1517
  %v1519 = vpop.f32.mrf.mxu0
  %1520 = vdwg.mxu0
  %1521 = vmatpush.bf16.msra.mxu0 %v1227
  %1522 = vmatpush.bf16.msra.mxu0 %v1225
  %1523 = vmatpush.bf16.msra.mxu0 %v1223
  %1524 = vmatpush.bf16.msra.mxu0 %v1221
  %1525 = vmatpush.bf16.msra.mxu0 %v1219
  %1526 = vmatpush.bf16.msra.mxu0 %v1217
  %1527 = vmatpush.bf16.msra.mxu0 %v1215
  %1528 = vmatpush.bf16.msra.mxu0 %v1213
  %1529 = vmatmul.bf16.gmra.mxu0 %v503
  %v1530 = vpop.f32.mrf.mxu0
  %v1531 = vadd.f32 %v1518, %v1530
  %v1532 = vpop.f32.mrf.mxu0
  %1533 = vdwg.mxu0
  %1534 = vmatpush.bf16.msra.mxu0 %v1243
  %1535 = vmatpush.bf16.msra.mxu0 %v1241
  %1536 = vmatpush.bf16.msra.mxu0 %v1239
  %1537 = vmatpush.bf16.msra.mxu0 %v1237
  %1538 = vmatpush.bf16.msra.mxu0 %v1235
  %1539 = vmatpush.bf16.msra.mxu0 %v1233
  %1540 = vmatpush.bf16.msra.mxu0 %v1231
  %1541 = vmatpush.bf16.msra.mxu0 %v1229
  %1542 = vmatmul.bf16.gmra.mxu0 %v504
  %v1543 = vpop.f32.mrf.mxu0
  %v1544 = vadd.f32 %v1531, %v1543
  %v1545 = vpop.f32.mrf.mxu0
  %1546 = vdwg.mxu0
  %1547 = vmatpush.bf16.msra.mxu0 %v1259
  %1548 = vmatpush.bf16.msra.mxu0 %v1257
  %1549 = vmatpush.bf16.msra.mxu0 %v1255
  %1550 = vmatpush.bf16.msra.mxu0 %v1253
  %1551 = vmatpush.bf16.msra.mxu0 %v1251
  %1552 = vmatpush.bf16.msra.mxu0 %v1249
  %1553 = vmatpush.bf16.msra.mxu0 %v1247
  %1554 = vmatpush.bf16.msra.mxu0 %v1245
  %1555 = vmatmul.bf16.gmra.mxu0 %v505
  %v1556 = vpop.f32.mrf.mxu0
  %v1557 = vadd.f32 %v1544, %v1556
  %v1558 = vpop.f32.mrf.mxu0
  %1559 = vdwg.mxu0
  %1560 = vmatpush.bf16.msra.mxu0 %v1275
  %1561 = vmatpush.bf16.msra.mxu0 %v1273
  %1562 = vmatpush.bf16.msra.mxu0 %v1271
  %1563 = vmatpush.bf16.msra.mxu0 %v1269
  %1564 = vmatpush.bf16.msra.mxu0 %v1267
  %1565 = vmatpush.bf16.msra.mxu0 %v1265
  %1566 = vmatpush.bf16.msra.mxu0 %v1263
  %1567 = vmatpush.bf16.msra.mxu0 %v1261
  %1568 = vmatmul.bf16.gmra.mxu0 %v506
  %v1569 = vpop.f32.mrf.mxu0
  %v1570 = vadd.f32 %v1557, %v1569
  %v1571 = vpop.f32.mrf.mxu0
  %1572 = vdwg.mxu0
  %1573 = vmatpush.bf16.msra.mxu0 %v1291
  %1574 = vmatpush.bf16.msra.mxu0 %v1289
  %1575 = vmatpush.bf16.msra.mxu0 %v1287
  %1576 = vmatpush.bf16.msra.mxu0 %v1285
  %1577 = vmatpush.bf16.msra.mxu0 %v1283
  %1578 = vmatpush.bf16.msra.mxu0 %v1281
  %1579 = vmatpush.bf16.msra.mxu0 %v1279
  %1580 = vmatpush.bf16.msra.mxu0 %v1277
  %1581 = vmatmul.bf16.gmra.mxu0 %v507
  %v1582 = vpop.f32.mrf.mxu0
  %v1583 = vadd.f32 %v1570, %v1582
  %v1584 = vpop.f32.mrf.mxu0
  %1585 = vdwg.mxu0
  %1586 = vmatpush.bf16.msra.mxu0 %v1307
  %1587 = vmatpush.bf16.msra.mxu0 %v1305
  %1588 = vmatpush.bf16.msra.mxu0 %v1303
  %1589 = vmatpush.bf16.msra.mxu0 %v1301
  %1590 = vmatpush.bf16.msra.mxu0 %v1299
  %1591 = vmatpush.bf16.msra.mxu0 %v1297
  %1592 = vmatpush.bf16.msra.mxu0 %v1295
  %1593 = vmatpush.bf16.msra.mxu0 %v1293
  %1594 = vmatmul.bf16.gmra.mxu0 %v508
  %v1595 = vpop.f32.mrf.mxu0
  %v1596 = vadd.f32 %v1583, %v1595
  %v1597 = vpop.f32.mrf.mxu0
  %1598 = vdwg.mxu0
  %1599 = vmatpush.bf16.msra.mxu0 %v1164
  %1600 = vmatpush.bf16.msra.mxu0 %v1162
  %1601 = vmatpush.bf16.msra.mxu0 %v1160
  %1602 = vmatpush.bf16.msra.mxu0 %v1158
  %1603 = vmatpush.bf16.msra.mxu0 %v1156
  %1604 = vmatpush.bf16.msra.mxu0 %v1154
  %1605 = vmatpush.bf16.msra.mxu0 %v1152
  %1606 = vmatpush.bf16.msra.mxu0 %v1150
  %1607 = vmatmul.bf16.gmra.mxu0 %v499
  %v1608 = vpop.f32.mrf.mxu0
  %v1609 = vadd.f32 0.0, %v1608
  %v1610 = vpop.f32.mrf.mxu0
  %1611 = vdwg.mxu0
  %1612 = vmatpush.bf16.msra.mxu0 %v1180
  %1613 = vmatpush.bf16.msra.mxu0 %v1178
  %1614 = vmatpush.bf16.msra.mxu0 %v1176
  %1615 = vmatpush.bf16.msra.mxu0 %v1174
  %1616 = vmatpush.bf16.msra.mxu0 %v1172
  %1617 = vmatpush.bf16.msra.mxu0 %v1170
  %1618 = vmatpush.bf16.msra.mxu0 %v1168
  %1619 = vmatpush.bf16.msra.mxu0 %v1166
  %1620 = vmatmul.bf16.gmra.mxu0 %v500
  %v1621 = vpop.f32.mrf.mxu0
  %v1622 = vadd.f32 %v1609, %v1621
  %v1623 = vpop.f32.mrf.mxu0
  %1624 = vdwg.mxu0
  %1625 = vmatpush.bf16.msra.mxu0 %v1196
  %1626 = vmatpush.bf16.msra.mxu0 %v1194
  %1627 = vmatpush.bf16.msra.mxu0 %v1192
  %1628 = vmatpush.bf16.msra.mxu0 %v1190
  %1629 = vmatpush.bf16.msra.mxu0 %v1188
  %1630 = vmatpush.bf16.msra.mxu0 %v1186
  %1631 = vmatpush.bf16.msra.mxu0 %v1184
  %1632 = vmatpush.bf16.msra.mxu0 %v1182
  %1633 = vmatmul.bf16.gmra.mxu0 %v501
  %v1634 = vpop.f32.mrf.mxu0
  %v1635 = vadd.f32 %v1622, %v1634
  %v1636 = vpop.f32.mrf.mxu0
  %1637 = vdwg.mxu0
  %1638 = vmatpush.bf16.msra.mxu0 %v1212
  %1639 = vmatpush.bf16.msra.mxu0 %v1210
  %1640 = vmatpush.bf16.msra.mxu0 %v1208
  %1641 = vmatpush.bf16.msra.mxu0 %v1206
  %1642 = vmatpush.bf16.msra.mxu0 %v1204
  %1643 = vmatpush.bf16.msra.mxu0 %v1202
  %1644 = vmatpush.bf16.msra.mxu0 %v1200
  %1645 = vmatpush.bf16.msra.mxu0 %v1198
  %1646 = vmatmul.bf16.gmra.mxu0 %v502
  %v1647 = vpop.f32.mrf.mxu0
  %v1648 = vadd.f32 %v1635, %v1647
  %v1649 = vpop.f32.mrf.mxu0
  %1650 = vdwg.mxu0
  %1651 = vmatpush.bf16.msra.mxu0 %v1228
  %1652 = vmatpush.bf16.msra.mxu0 %v1226
  %1653 = vmatpush.bf16.msra.mxu0 %v1224
  %1654 = vmatpush.bf16.msra.mxu0 %v1222
  %1655 = vmatpush.bf16.msra.mxu0 %v1220
  %1656 = vmatpush.bf16.msra.mxu0 %v1218
  %1657 = vmatpush.bf16.msra.mxu0 %v1216
  %1658 = vmatpush.bf16.msra.mxu0 %v1214
  %1659 = vmatmul.bf16.gmra.mxu0 %v503
  %v1660 = vpop.f32.mrf.mxu0
  %v1661 = vadd.f32 %v1648, %v1660
  %v1662 = vpop.f32.mrf.mxu0
  %1663 = vdwg.mxu0
  %1664 = vmatpush.bf16.msra.mxu0 %v1244
  %1665 = vmatpush.bf16.msra.mxu0 %v1242
  %1666 = vmatpush.bf16.msra.mxu0 %v1240
  %1667 = vmatpush.bf16.msra.mxu0 %v1238
  %1668 = vmatpush.bf16.msra.mxu0 %v1236
  %1669 = vmatpush.bf16.msra.mxu0 %v1234
  %1670 = vmatpush.bf16.msra.mxu0 %v1232
  %1671 = vmatpush.bf16.msra.mxu0 %v1230
  %1672 = vmatmul.bf16.gmra.mxu0 %v504
  %v1673 = vpop.f32.mrf.mxu0
  %v1674 = vadd.f32 %v1661, %v1673
  %v1675 = vpop.f32.mrf.mxu0
  %1676 = vdwg.mxu0
  %1677 = vmatpush.bf16.msra.mxu0 %v1260
  %1678 = vmatpush.bf16.msra.mxu0 %v1258
  %1679 = vmatpush.bf16.msra.mxu0 %v1256
  %1680 = vmatpush.bf16.msra.mxu0 %v1254
  %1681 = vmatpush.bf16.msra.mxu0 %v1252
  %1682 = vmatpush.bf16.msra.mxu0 %v1250
  %1683 = vmatpush.bf16.msra.mxu0 %v1248
  %1684 = vmatpush.bf16.msra.mxu0 %v1246
  %1685 = vmatmul.bf16.gmra.mxu0 %v505
  %v1686 = vpop.f32.mrf.mxu0
  %v1687 = vadd.f32 %v1674, %v1686
  %v1688 = vpop.f32.mrf.mxu0
  %1689 = vdwg.mxu0
  %1690 = vmatpush.bf16.msra.mxu0 %v1276
  %1691 = vmatpush.bf16.msra.mxu0 %v1274
  %1692 = vmatpush.bf16.msra.mxu0 %v1272
  %1693 = vmatpush.bf16.msra.mxu0 %v1270
  %1694 = vmatpush.bf16.msra.mxu0 %v1268
  %1695 = vmatpush.bf16.msra.mxu0 %v1266
  %1696 = vmatpush.bf16.msra.mxu0 %v1264
  %1697 = vmatpush.bf16.msra.mxu0 %v1262
  %1698 = vmatmul.bf16.gmra.mxu0 %v506
  %v1699 = vpop.f32.mrf.mxu0
  %v1700 = vadd.f32 %v1687, %v1699
  %v1701 = vpop.f32.mrf.mxu0
  %1702 = vdwg.mxu0
  %1703 = vmatpush.bf16.msra.mxu0 %v1292
  %1704 = vmatpush.bf16.msra.mxu0 %v1290
  %1705 = vmatpush.bf16.msra.mxu0 %v1288
  %1706 = vmatpush.bf16.msra.mxu0 %v1286
  %1707 = vmatpush.bf16.msra.mxu0 %v1284
  %1708 = vmatpush.bf16.msra.mxu0 %v1282
  %1709 = vmatpush.bf16.msra.mxu0 %v1280
  %1710 = vmatpush.bf16.msra.mxu0 %v1278
  %1711 = vmatmul.bf16.gmra.mxu0 %v507
  %v1712 = vpop.f32.mrf.mxu0
  %v1713 = vadd.f32 %v1700, %v1712
  %v1714 = vpop.f32.mrf.mxu0
  %1715 = vdwg.mxu0
  %1716 = vmatpush.bf16.msra.mxu0 %v1308
  %1717 = vmatpush.bf16.msra.mxu0 %v1306
  %1718 = vmatpush.bf16.msra.mxu0 %v1304
  %1719 = vmatpush.bf16.msra.mxu0 %v1302
  %1720 = vmatpush.bf16.msra.mxu0 %v1300
  %1721 = vmatpush.bf16.msra.mxu0 %v1298
  %1722 = vmatpush.bf16.msra.mxu0 %v1296
  %1723 = vmatpush.bf16.msra.mxu0 %v1294
  %1724 = vmatmul.bf16.gmra.mxu0 %v508
  %v1725 = vpop.f32.mrf.mxu0
  %v1726 = vadd.f32 %v1713, %v1725
  %v1727 = vpop.f32.mrf.mxu0
  %1728 = vdwg.mxu0
  %v1734 = vunpack.c.l.b16 %v334
  %v1735 = vunpack.c.h.b16 %v334
  %v1736 = vunpack.c.l.b16 %v335
  %v1737 = vunpack.c.h.b16 %v335
  %v1738 = vunpack.c.l.b16 %v336
  %v1739 = vunpack.c.h.b16 %v336
  %v1740 = vunpack.c.l.b16 %v337
  %v1741 = vunpack.c.h.b16 %v337
  %v1742 = vunpack.c.l.b16 %v338
  %v1743 = vunpack.c.h.b16 %v338
  %v1744 = vpack.c.b16 %v1734, %v1734
  %v1745 = vpack.c.b16 %v1735, %v1735
  %v1746 = vpack.c.b16 %v1736, %v1736
  %v1747 = vpack.c.b16 %v1737, %v1737
  %v1748 = vpack.c.b16 %v1738, %v1738
  %v1749 = vpack.c.b16 %v1739, %v1739
  %v1750 = vpack.c.b16 %v1740, %v1740
  %v1751 = vpack.c.b16 %v1741, %v1741
  %v1752 = vpack.c.b16 %v1742, %v1742
  %v1753 = vpack.c.b16 %v1743, %v1743
  %v1924 = vunpack.c.l.b16 %v339
  %v1925 = vunpack.c.h.b16 %v339
  %v1926 = vunpack.c.l.b16 %v340
  %v1927 = vunpack.c.h.b16 %v340
  %v1928 = vunpack.c.l.b16 %v341
  %v1929 = vunpack.c.h.b16 %v341
  %v1930 = vunpack.c.l.b16 %v342
  %v1931 = vunpack.c.h.b16 %v342
  %v1932 = vunpack.c.l.b16 %v343
  %v1933 = vunpack.c.h.b16 %v343
  %v1934 = vunpack.c.l.b16 %v344
  %v1935 = vunpack.c.h.b16 %v344
  %v1936 = vunpack.c.l.b16 %v345
  %v1937 = vunpack.c.h.b16 %v345
  %v1938 = vunpack.c.l.b16 %v346
  %v1939 = vunpack.c.h.b16 %v346
  %v1940 = vunpack.c.l.b16 %v347
  %v1941 = vunpack.c.h.b16 %v347
  %v1942 = vunpack.c.l.b16 %v348
  %v1943 = vunpack.c.h.b16 %v348
  %v1944 = vunpack.c.l.b16 %v349
  %v1945 = vunpack.c.h.b16 %v349
  %v1946 = vunpack.c.l.b16 %v350
  %v1947 = vunpack.c.h.b16 %v350
  %v1948 = vunpack.c.l.b16 %v351
  %v1949 = vunpack.c.h.b16 %v351
  %v1950 = vunpack.c.l.b16 %v352
  %v1951 = vunpack.c.h.b16 %v352
  %v1952 = vunpack.c.l.b16 %v353
  %v1953 = vunpack.c.h.b16 %v353
  %v1954 = vunpack.c.l.b16 %v354
  %v1955 = vunpack.c.h.b16 %v354
  %v1956 = vunpack.c.l.b16 %v355
  %v1957 = vunpack.c.h.b16 %v355
  %v1958 = vunpack.c.l.b16 %v356
  %v1959 = vunpack.c.h.b16 %v356
  %v1960 = vunpack.c.l.b16 %v357
  %v1961 = vunpack.c.h.b16 %v357
  %v1962 = vunpack.c.l.b16 %v358
  %v1963 = vunpack.c.h.b16 %v358
  %v1964 = vunpack.c.l.b16 %v359
  %v1965 = vunpack.c.h.b16 %v359
  %v1966 = vunpack.c.l.b16 %v360
  %v1967 = vunpack.c.h.b16 %v360
  %v1968 = vunpack.c.l.b16 %v361
  %v1969 = vunpack.c.h.b16 %v361
  %v1970 = vunpack.c.l.b16 %v362
  %v1971 = vunpack.c.h.b16 %v362
  %v1972 = vunpack.c.l.b16 %v363
  %v1973 = vunpack.c.h.b16 %v363
  %v1974 = vunpack.c.l.b16 %v364
  %v1975 = vunpack.c.h.b16 %v364
  %v1976 = vunpack.c.l.b16 %v365
  %v1977 = vunpack.c.h.b16 %v365
  %v1978 = vunpack.c.l.b16 %v366
  %v1979 = vunpack.c.h.b16 %v366
  %v1980 = vunpack.c.l.b16 %v367
  %v1981 = vunpack.c.h.b16 %v367
  %v1982 = vunpack.c.l.b16 %v368
  %v1983 = vunpack.c.h.b16 %v368
  %v1984 = vunpack.c.l.b16 %v369
  %v1985 = vunpack.c.h.b16 %v369
  %v1986 = vunpack.c.l.b16 %v370
  %v1987 = vunpack.c.h.b16 %v370
  %v1988 = vunpack.c.l.b16 %v371
  %v1989 = vunpack.c.h.b16 %v371
  %v1990 = vunpack.c.l.b16 %v372
  %v1991 = vunpack.c.h.b16 %v372
  %v1992 = vunpack.c.l.b16 %v373
  %v1993 = vunpack.c.h.b16 %v373
  %v1994 = vunpack.c.l.b16 %v374
  %v1995 = vunpack.c.h.b16 %v374
  %v1996 = vunpack.c.l.b16 %v375
  %v1997 = vunpack.c.h.b16 %v375
  %v1998 = vunpack.c.l.b16 %v376
  %v1999 = vunpack.c.h.b16 %v376
  %v2000 = vunpack.c.l.b16 %v377
  %v2001 = vunpack.c.h.b16 %v377
  %v2002 = vunpack.c.l.b16 %v378
  %v2003 = vunpack.c.h.b16 %v378
  %v2004 = vunpack.c.l.b16 %v379
  %v2005 = vunpack.c.h.b16 %v379
  %v2006 = vunpack.c.l.b16 %v380
  %v2007 = vunpack.c.h.b16 %v380
  %v2008 = vunpack.c.l.b16 %v381
  %v2009 = vunpack.c.h.b16 %v381
  %v2010 = vunpack.c.l.b16 %v382
  %v2011 = vunpack.c.h.b16 %v382
  %v2012 = vunpack.c.l.b16 %v383
  %v2013 = vunpack.c.h.b16 %v383
  %v2014 = vunpack.c.l.b16 %v384
  %v2015 = vunpack.c.h.b16 %v384
  %v2016 = vunpack.c.l.b16 %v385
  %v2017 = vunpack.c.h.b16 %v385
  %v2018 = vunpack.c.l.b16 %v386
  %v2019 = vunpack.c.h.b16 %v386
  %v2020 = vunpack.c.l.b16 %v387
  %v2021 = vunpack.c.h.b16 %v387
  %v2022 = vunpack.c.l.b16 %v388
  %v2023 = vunpack.c.h.b16 %v388
  %v2024 = vunpack.c.l.b16 %v389
  %v2025 = vunpack.c.h.b16 %v389
  %v2026 = vunpack.c.l.b16 %v390
  %v2027 = vunpack.c.h.b16 %v390
  %v2028 = vunpack.c.l.b16 %v391
  %v2029 = vunpack.c.h.b16 %v391
  %v2030 = vunpack.c.l.b16 %v392
  %v2031 = vunpack.c.h.b16 %v392
  %v2032 = vunpack.c.l.b16 %v393
  %v2033 = vunpack.c.h.b16 %v393
  %v2034 = vunpack.c.l.b16 %v394
  %v2035 = vunpack.c.h.b16 %v394
  %v2036 = vunpack.c.l.b16 %v395
  %v2037 = vunpack.c.h.b16 %v395
  %v2038 = vunpack.c.l.b16 %v396
  %v2039 = vunpack.c.h.b16 %v396
  %v2040 = vunpack.c.l.b16 %v397
  %v2041 = vunpack.c.h.b16 %v397
  %v2042 = vunpack.c.l.b16 %v398
  %v2043 = vunpack.c.h.b16 %v398
  %v2044 = vunpack.c.l.b16 %v399
  %v2045 = vunpack.c.h.b16 %v399
  %v2046 = vunpack.c.l.b16 %v400
  %v2047 = vunpack.c.h.b16 %v400
  %v2048 = vunpack.c.l.b16 %v401
  %v2049 = vunpack.c.h.b16 %v401
  %v2050 = vunpack.c.l.b16 %v402
  %v2051 = vunpack.c.h.b16 %v402
  %v2052 = vunpack.c.l.b16 %v403
  %v2053 = vunpack.c.h.b16 %v403
  %v2054 = vunpack.c.l.b16 %v404
  %v2055 = vunpack.c.h.b16 %v404
  %v2056 = vunpack.c.l.b16 %v405
  %v2057 = vunpack.c.h.b16 %v405
  %v2058 = vunpack.c.l.b16 %v406
  %v2059 = vunpack.c.h.b16 %v406
  %v2060 = vunpack.c.l.b16 %v407
  %v2061 = vunpack.c.h.b16 %v407
  %v2062 = vunpack.c.l.b16 %v408
  %v2063 = vunpack.c.h.b16 %v408
  %v2064 = vunpack.c.l.b16 %v409
  %v2065 = vunpack.c.h.b16 %v409
  %v2066 = vunpack.c.l.b16 %v410
  %v2067 = vunpack.c.h.b16 %v410
  %v2068 = vunpack.c.l.b16 %v411
  %v2069 = vunpack.c.h.b16 %v411
  %v2070 = vunpack.c.l.b16 %v412
  %v2071 = vunpack.c.h.b16 %v412
  %v2072 = vunpack.c.l.b16 %v413
  %v2073 = vunpack.c.h.b16 %v413
  %v2074 = vunpack.c.l.b16 %v414
  %v2075 = vunpack.c.h.b16 %v414
  %v2076 = vunpack.c.l.b16 %v415
  %v2077 = vunpack.c.h.b16 %v415
  %v2078 = vunpack.c.l.b16 %v416
  %v2079 = vunpack.c.h.b16 %v416
  %v2080 = vunpack.c.l.b16 %v417
  %v2081 = vunpack.c.h.b16 %v417
  %v2082 = vunpack.c.l.b16 %v418
  %v2083 = vunpack.c.h.b16 %v418
  %v2084 = vunpack.c.l.b16 %v419
  %v2085 = vunpack.c.h.b16 %v419
  %v2086 = vunpack.c.l.b16 %v420
  %v2087 = vunpack.c.h.b16 %v420
  %v2088 = vunpack.c.l.b16 %v421
  %v2089 = vunpack.c.h.b16 %v421
  %v2090 = vunpack.c.l.b16 %v422
  %v2091 = vunpack.c.h.b16 %v422
  %v2092 = vunpack.c.l.b16 %v423
  %v2093 = vunpack.c.h.b16 %v423
  %v2094 = vunpack.c.l.b16 %v424
  %v2095 = vunpack.c.h.b16 %v424
  %v2096 = vunpack.c.l.b16 %v425
  %v2097 = vunpack.c.h.b16 %v425
  %v2098 = vunpack.c.l.b16 %v426
  %v2099 = vunpack.c.h.b16 %v426
  %v2100 = vunpack.c.l.b16 %v427
  %v2101 = vunpack.c.h.b16 %v427
  %v2102 = vunpack.c.l.b16 %v428
  %v2103 = vunpack.c.h.b16 %v428
  %v2104 = vunpack.c.l.b16 %v429
  %v2105 = vunpack.c.h.b16 %v429
  %v2106 = vunpack.c.l.b16 %v430
  %v2107 = vunpack.c.h.b16 %v430
  %v2108 = vunpack.c.l.b16 %v431
  %v2109 = vunpack.c.h.b16 %v431
  %v2110 = vunpack.c.l.b16 %v432
  %v2111 = vunpack.c.h.b16 %v432
  %v2112 = vunpack.c.l.b16 %v433
  %v2113 = vunpack.c.h.b16 %v433
  %v2114 = vunpack.c.l.b16 %v434
  %v2115 = vunpack.c.h.b16 %v434
  %v2116 = vunpack.c.l.b16 %v435
  %v2117 = vunpack.c.h.b16 %v435
  %v2118 = vunpack.c.l.b16 %v436
  %v2119 = vunpack.c.h.b16 %v436
  %v2120 = vunpack.c.l.b16 %v437
  %v2121 = vunpack.c.h.b16 %v437
  %v2122 = vunpack.c.l.b16 %v438
  %v2123 = vunpack.c.h.b16 %v438
  %v2124 = vunpack.c.l.b16 %v439
  %v2125 = vunpack.c.h.b16 %v439
  %v2126 = vunpack.c.l.b16 %v440
  %v2127 = vunpack.c.h.b16 %v440
  %v2128 = vunpack.c.l.b16 %v441
  %v2129 = vunpack.c.h.b16 %v441
  %v2130 = vunpack.c.l.b16 %v442
  %v2131 = vunpack.c.h.b16 %v442
  %v2132 = vunpack.c.l.b16 %v443
  %v2133 = vunpack.c.h.b16 %v443
  %v2134 = vunpack.c.l.b16 %v444
  %v2135 = vunpack.c.h.b16 %v444
  %v2136 = vunpack.c.l.b16 %v445
  %v2137 = vunpack.c.h.b16 %v445
  %v2138 = vunpack.c.l.b16 %v446
  %v2139 = vunpack.c.h.b16 %v446
  %v2140 = vunpack.c.l.b16 %v447
  %v2141 = vunpack.c.h.b16 %v447
  %v2142 = vunpack.c.l.b16 %v448
  %v2143 = vunpack.c.h.b16 %v448
  %v2144 = vunpack.c.l.b16 %v449
  %v2145 = vunpack.c.h.b16 %v449
  %v2146 = vunpack.c.l.b16 %v450
  %v2147 = vunpack.c.h.b16 %v450
  %v2148 = vunpack.c.l.b16 %v451
  %v2149 = vunpack.c.h.b16 %v451
  %v2150 = vunpack.c.l.b16 %v452
  %v2151 = vunpack.c.h.b16 %v452
  %v2152 = vunpack.c.l.b16 %v453
  %v2153 = vunpack.c.h.b16 %v453
  %v2154 = vunpack.c.l.b16 %v454
  %v2155 = vunpack.c.h.b16 %v454
  %v2156 = vunpack.c.l.b16 %v455
  %v2157 = vunpack.c.h.b16 %v455
  %v2158 = vunpack.c.l.b16 %v456
  %v2159 = vunpack.c.h.b16 %v456
  %v2160 = vunpack.c.l.b16 %v457
  %v2161 = vunpack.c.h.b16 %v457
  %v2162 = vunpack.c.l.b16 %v458
  %v2163 = vunpack.c.h.b16 %v458
  %v2164 = vunpack.c.l.b16 %v459
  %v2165 = vunpack.c.h.b16 %v459
  %v2166 = vunpack.c.l.b16 %v460
  %v2167 = vunpack.c.h.b16 %v460
  %v2168 = vunpack.c.l.b16 %v461
  %v2169 = vunpack.c.h.b16 %v461
  %v2170 = vunpack.c.l.b16 %v462
  %v2171 = vunpack.c.h.b16 %v462
  %v2172 = vunpack.c.l.b16 %v463
  %v2173 = vunpack.c.h.b16 %v463
  %v2174 = vunpack.c.l.b16 %v464
  %v2175 = vunpack.c.h.b16 %v464
  %v2176 = vunpack.c.l.b16 %v465
  %v2177 = vunpack.c.h.b16 %v465
  %v2178 = vunpack.c.l.b16 %v466
  %v2179 = vunpack.c.h.b16 %v466
  %v2180 = vunpack.c.l.b16 %v467
  %v2181 = vunpack.c.h.b16 %v467
  %v2182 = vunpack.c.l.b16 %v468
  %v2183 = vunpack.c.h.b16 %v468
  %v2184 = vunpack.c.l.b16 %v469
  %v2185 = vunpack.c.h.b16 %v469
  %v2186 = vunpack.c.l.b16 %v470
  %v2187 = vunpack.c.h.b16 %v470
  %v2188 = vunpack.c.l.b16 %v471
  %v2189 = vunpack.c.h.b16 %v471
  %v2190 = vunpack.c.l.b16 %v472
  %v2191 = vunpack.c.h.b16 %v472
  %v2192 = vunpack.c.l.b16 %v473
  %v2193 = vunpack.c.h.b16 %v473
  %v2194 = vunpack.c.l.b16 %v474
  %v2195 = vunpack.c.h.b16 %v474
  %v2196 = vunpack.c.l.b16 %v475
  %v2197 = vunpack.c.h.b16 %v475
  %v2198 = vunpack.c.l.b16 %v476
  %v2199 = vunpack.c.h.b16 %v476
  %v2200 = vunpack.c.l.b16 %v477
  %v2201 = vunpack.c.h.b16 %v477
  %v2202 = vunpack.c.l.b16 %v478
  %v2203 = vunpack.c.h.b16 %v478
  %v2204 = vunpack.c.l.b16 %v479
  %v2205 = vunpack.c.h.b16 %v479
  %v2206 = vunpack.c.l.b16 %v480
  %v2207 = vunpack.c.h.b16 %v480
  %v2208 = vunpack.c.l.b16 %v481
  %v2209 = vunpack.c.h.b16 %v481
  %v2210 = vunpack.c.l.b16 %v482
  %v2211 = vunpack.c.h.b16 %v482
  %v2212 = vunpack.c.l.b16 %v483
  %v2213 = vunpack.c.h.b16 %v483
  %v2214 = vunpack.c.l.b16 %v484
  %v2215 = vunpack.c.h.b16 %v484
  %v2216 = vunpack.c.l.b16 %v485
  %v2217 = vunpack.c.h.b16 %v485
  %v2218 = vunpack.c.l.b16 %v486
  %v2219 = vunpack.c.h.b16 %v486
  %v2220 = vunpack.c.l.b16 %v487
  %v2221 = vunpack.c.h.b16 %v487
  %v2222 = vunpack.c.l.b16 %v488
  %v2223 = vunpack.c.h.b16 %v488
  %v2224 = vunpack.c.l.b16 %v489
  %v2225 = vunpack.c.h.b16 %v489
  %v2226 = vunpack.c.l.b16 %v490
  %v2227 = vunpack.c.h.b16 %v490
  %v2228 = vunpack.c.l.b16 %v491
  %v2229 = vunpack.c.h.b16 %v491
  %v2230 = vunpack.c.l.b16 %v492
  %v2231 = vunpack.c.h.b16 %v492
  %v2232 = vunpack.c.l.b16 %v493
  %v2233 = vunpack.c.h.b16 %v493
  %v2234 = vunpack.c.l.b16 %v494
  %v2235 = vunpack.c.h.b16 %v494
  %v2236 = vunpack.c.l.b16 %v495
  %v2237 = vunpack.c.h.b16 %v495
  %v2238 = vunpack.c.l.b16 %v496
  %v2239 = vunpack.c.h.b16 %v496
  %v2240 = vunpack.c.l.b16 %v497
  %v2241 = vunpack.c.h.b16 %v497
  %v2242 = vunpack.c.l.b16 %v498
  %v2243 = vunpack.c.h.b16 %v498
  %v2244 = vpack.c.b16 %v1926, %v1924
  %v2245 = vpack.c.b16 %v1927, %v1925
  %v2246 = vpack.c.b16 %v1930, %v1928
  %v2247 = vpack.c.b16 %v1931, %v1929
  %v2248 = vpack.c.b16 %v1934, %v1932
  %v2249 = vpack.c.b16 %v1935, %v1933
  %v2250 = vpack.c.b16 %v1938, %v1936
  %v2251 = vpack.c.b16 %v1939, %v1937
  %v2252 = vpack.c.b16 %v1942, %v1940
  %v2253 = vpack.c.b16 %v1943, %v1941
  %v2254 = vpack.c.b16 %v1946, %v1944
  %v2255 = vpack.c.b16 %v1947, %v1945
  %v2256 = vpack.c.b16 %v1950, %v1948
  %v2257 = vpack.c.b16 %v1951, %v1949
  %v2258 = vpack.c.b16 %v1954, %v1952
  %v2259 = vpack.c.b16 %v1955, %v1953
  %v2260 = vpack.c.b16 %v1958, %v1956
  %v2261 = vpack.c.b16 %v1959, %v1957
  %v2262 = vpack.c.b16 %v1962, %v1960
  %v2263 = vpack.c.b16 %v1963, %v1961
  %v2264 = vpack.c.b16 %v1966, %v1964
  %v2265 = vpack.c.b16 %v1967, %v1965
  %v2266 = vpack.c.b16 %v1970, %v1968
  %v2267 = vpack.c.b16 %v1971, %v1969
  %v2268 = vpack.c.b16 %v1974, %v1972
  %v2269 = vpack.c.b16 %v1975, %v1973
  %v2270 = vpack.c.b16 %v1978, %v1976
  %v2271 = vpack.c.b16 %v1979, %v1977
  %v2272 = vpack.c.b16 %v1982, %v1980
  %v2273 = vpack.c.b16 %v1983, %v1981
  %v2274 = vpack.c.b16 %v1986, %v1984
  %v2275 = vpack.c.b16 %v1987, %v1985
  %v2276 = vpack.c.b16 %v1990, %v1988
  %v2277 = vpack.c.b16 %v1991, %v1989
  %v2278 = vpack.c.b16 %v1994, %v1992
  %v2279 = vpack.c.b16 %v1995, %v1993
  %v2280 = vpack.c.b16 %v1998, %v1996
  %v2281 = vpack.c.b16 %v1999, %v1997
  %v2282 = vpack.c.b16 %v2002, %v2000
  %v2283 = vpack.c.b16 %v2003, %v2001
  %v2284 = vpack.c.b16 %v2006, %v2004
  %v2285 = vpack.c.b16 %v2007, %v2005
  %v2286 = vpack.c.b16 %v2010, %v2008
  %v2287 = vpack.c.b16 %v2011, %v2009
  %v2288 = vpack.c.b16 %v2014, %v2012
  %v2289 = vpack.c.b16 %v2015, %v2013
  %v2290 = vpack.c.b16 %v2018, %v2016
  %v2291 = vpack.c.b16 %v2019, %v2017
  %v2292 = vpack.c.b16 %v2022, %v2020
  %v2293 = vpack.c.b16 %v2023, %v2021
  %v2294 = vpack.c.b16 %v2026, %v2024
  %v2295 = vpack.c.b16 %v2027, %v2025
  %v2296 = vpack.c.b16 %v2030, %v2028
  %v2297 = vpack.c.b16 %v2031, %v2029
  %v2298 = vpack.c.b16 %v2034, %v2032
  %v2299 = vpack.c.b16 %v2035, %v2033
  %v2300 = vpack.c.b16 %v2038, %v2036
  %v2301 = vpack.c.b16 %v2039, %v2037
  %v2302 = vpack.c.b16 %v2042, %v2040
  %v2303 = vpack.c.b16 %v2043, %v2041
  %v2304 = vpack.c.b16 %v2046, %v2044
  %v2305 = vpack.c.b16 %v2047, %v2045
  %v2306 = vpack.c.b16 %v2050, %v2048
  %v2307 = vpack.c.b16 %v2051, %v2049
  %v2308 = vpack.c.b16 %v2054, %v2052
  %v2309 = vpack.c.b16 %v2055, %v2053
  %v2310 = vpack.c.b16 %v2058, %v2056
  %v2311 = vpack.c.b16 %v2059, %v2057
  %v2312 = vpack.c.b16 %v2062, %v2060
  %v2313 = vpack.c.b16 %v2063, %v2061
  %v2314 = vpack.c.b16 %v2066, %v2064
  %v2315 = vpack.c.b16 %v2067, %v2065
  %v2316 = vpack.c.b16 %v2070, %v2068
  %v2317 = vpack.c.b16 %v2071, %v2069
  %v2318 = vpack.c.b16 %v2074, %v2072
  %v2319 = vpack.c.b16 %v2075, %v2073
  %v2320 = vpack.c.b16 %v2078, %v2076
  %v2321 = vpack.c.b16 %v2079, %v2077
  %v2322 = vpack.c.b16 %v2082, %v2080
  %v2323 = vpack.c.b16 %v2083, %v2081
  %v2324 = vpack.c.b16 %v2086, %v2084
  %v2325 = vpack.c.b16 %v2087, %v2085
  %v2326 = vpack.c.b16 %v2090, %v2088
  %v2327 = vpack.c.b16 %v2091, %v2089
  %v2328 = vpack.c.b16 %v2094, %v2092
  %v2329 = vpack.c.b16 %v2095, %v2093
  %v2330 = vpack.c.b16 %v2098, %v2096
  %v2331 = vpack.c.b16 %v2099, %v2097
  %v2332 = vpack.c.b16 %v2102, %v2100
  %v2333 = vpack.c.b16 %v2103, %v2101
  %v2334 = vpack.c.b16 %v2106, %v2104
  %v2335 = vpack.c.b16 %v2107, %v2105
  %v2336 = vpack.c.b16 %v2110, %v2108
  %v2337 = vpack.c.b16 %v2111, %v2109
  %v2338 = vpack.c.b16 %v2114, %v2112
  %v2339 = vpack.c.b16 %v2115, %v2113
  %v2340 = vpack.c.b16 %v2118, %v2116
  %v2341 = vpack.c.b16 %v2119, %v2117
  %v2342 = vpack.c.b16 %v2122, %v2120
  %v2343 = vpack.c.b16 %v2123, %v2121
  %v2344 = vpack.c.b16 %v2126, %v2124
  %v2345 = vpack.c.b16 %v2127, %v2125
  %v2346 = vpack.c.b16 %v2130, %v2128
  %v2347 = vpack.c.b16 %v2131, %v2129
  %v2348 = vpack.c.b16 %v2134, %v2132
  %v2349 = vpack.c.b16 %v2135, %v2133
  %v2350 = vpack.c.b16 %v2138, %v2136
  %v2351 = vpack.c.b16 %v2139, %v2137
  %v2352 = vpack.c.b16 %v2142, %v2140
  %v2353 = vpack.c.b16 %v2143, %v2141
  %v2354 = vpack.c.b16 %v2146, %v2144
  %v2355 = vpack.c.b16 %v2147, %v2145
  %v2356 = vpack.c.b16 %v2150, %v2148
  %v2357 = vpack.c.b16 %v2151, %v2149
  %v2358 = vpack.c.b16 %v2154, %v2152
  %v2359 = vpack.c.b16 %v2155, %v2153
  %v2360 = vpack.c.b16 %v2158, %v2156
  %v2361 = vpack.c.b16 %v2159, %v2157
  %v2362 = vpack.c.b16 %v2162, %v2160
  %v2363 = vpack.c.b16 %v2163, %v2161
  %v2364 = vpack.c.b16 %v2166, %v2164
  %v2365 = vpack.c.b16 %v2167, %v2165
  %v2366 = vpack.c.b16 %v2170, %v2168
  %v2367 = vpack.c.b16 %v2171, %v2169
  %v2368 = vpack.c.b16 %v2174, %v2172
  %v2369 = vpack.c.b16 %v2175, %v2173
  %v2370 = vpack.c.b16 %v2178, %v2176
  %v2371 = vpack.c.b16 %v2179, %v2177
  %v2372 = vpack.c.b16 %v2182, %v2180
  %v2373 = vpack.c.b16 %v2183, %v2181
  %v2374 = vpack.c.b16 %v2186, %v2184
  %v2375 = vpack.c.b16 %v2187, %v2185
  %v2376 = vpack.c.b16 %v2190, %v2188
  %v2377 = vpack.c.b16 %v2191, %v2189
  %v2378 = vpack.c.b16 %v2194, %v2192
  %v2379 = vpack.c.b16 %v2195, %v2193
  %v2380 = vpack.c.b16 %v2198, %v2196
  %v2381 = vpack.c.b16 %v2199, %v2197
  %v2382 = vpack.c.b16 %v2202, %v2200
  %v2383 = vpack.c.b16 %v2203, %v2201
  %v2384 = vpack.c.b16 %v2206, %v2204
  %v2385 = vpack.c.b16 %v2207, %v2205
  %v2386 = vpack.c.b16 %v2210, %v2208
  %v2387 = vpack.c.b16 %v2211, %v2209
  %v2388 = vpack.c.b16 %v2214, %v2212
  %v2389 = vpack.c.b16 %v2215, %v2213
  %v2390 = vpack.c.b16 %v2218, %v2216
  %v2391 = vpack.c.b16 %v2219, %v2217
  %v2392 = vpack.c.b16 %v2222, %v2220
  %v2393 = vpack.c.b16 %v2223, %v2221
  %v2394 = vpack.c.b16 %v2226, %v2224
  %v2395 = vpack.c.b16 %v2227, %v2225
  %v2396 = vpack.c.b16 %v2230, %v2228
  %v2397 = vpack.c.b16 %v2231, %v2229
  %v2398 = vpack.c.b16 %v2234, %v2232
  %v2399 = vpack.c.b16 %v2235, %v2233
  %v2400 = vpack.c.b16 %v2238, %v2236
  %v2401 = vpack.c.b16 %v2239, %v2237
  %v2402 = vpack.c.b16 %v2242, %v2240
  %v2403 = vpack.c.b16 %v2243, %v2241
  %2564 = vmatpush.bf16.msra.mxu0 %v2258
  %2565 = vmatpush.bf16.msra.mxu0 %v2256
  %2566 = vmatpush.bf16.msra.mxu0 %v2254
  %2567 = vmatpush.bf16.msra.mxu0 %v2252
  %2568 = vmatpush.bf16.msra.mxu0 %v2250
  %2569 = vmatpush.bf16.msra.mxu0 %v2248
  %2570 = vmatpush.bf16.msra.mxu0 %v2246
  %2571 = vmatpush.bf16.msra.mxu0 %v2244
  %2572 = vmatmul.bf16.gmra.mxu0 %v1744
  %v2573 = vpop.f32.mrf.mxu0
  %v2574 = vadd.f32 %v1596, %v2573
  %v2575 = vpop.f32.mrf.mxu0
  %2576 = vdwg.mxu0
  %2577 = vmatpush.bf16.msra.mxu0 %v2274
  %2578 = vmatpush.bf16.msra.mxu0 %v2272
  %2579 = vmatpush.bf16.msra.mxu0 %v2270
  %2580 = vmatpush.bf16.msra.mxu0 %v2268
  %2581 = vmatpush.bf16.msra.mxu0 %v2266
  %2582 = vmatpush.bf16.msra.mxu0 %v2264
  %2583 = vmatpush.bf16.msra.mxu0 %v2262
  %2584 = vmatpush.bf16.msra.mxu0 %v2260
  %2585 = vmatmul.bf16.gmra.mxu0 %v1745
  %v2586 = vpop.f32.mrf.mxu0
  %v2587 = vadd.f32 %v2574, %v2586
  %v2588 = vpop.f32.mrf.mxu0
  %2589 = vdwg.mxu0
  %2590 = vmatpush.bf16.msra.mxu0 %v2290
  %2591 = vmatpush.bf16.msra.mxu0 %v2288
  %2592 = vmatpush.bf16.msra.mxu0 %v2286
  %2593 = vmatpush.bf16.msra.mxu0 %v2284
  %2594 = vmatpush.bf16.msra.mxu0 %v2282
  %2595 = vmatpush.bf16.msra.mxu0 %v2280
  %2596 = vmatpush.bf16.msra.mxu0 %v2278
  %2597 = vmatpush.bf16.msra.mxu0 %v2276
  %2598 = vmatmul.bf16.gmra.mxu0 %v1746
  %v2599 = vpop.f32.mrf.mxu0
  %v2600 = vadd.f32 %v2587, %v2599
  %v2601 = vpop.f32.mrf.mxu0
  %2602 = vdwg.mxu0
  %2603 = vmatpush.bf16.msra.mxu0 %v2306
  %2604 = vmatpush.bf16.msra.mxu0 %v2304
  %2605 = vmatpush.bf16.msra.mxu0 %v2302
  %2606 = vmatpush.bf16.msra.mxu0 %v2300
  %2607 = vmatpush.bf16.msra.mxu0 %v2298
  %2608 = vmatpush.bf16.msra.mxu0 %v2296
  %2609 = vmatpush.bf16.msra.mxu0 %v2294
  %2610 = vmatpush.bf16.msra.mxu0 %v2292
  %2611 = vmatmul.bf16.gmra.mxu0 %v1747
  %v2612 = vpop.f32.mrf.mxu0
  %v2613 = vadd.f32 %v2600, %v2612
  %v2614 = vpop.f32.mrf.mxu0
  %2615 = vdwg.mxu0
  %2616 = vmatpush.bf16.msra.mxu0 %v2322
  %2617 = vmatpush.bf16.msra.mxu0 %v2320
  %2618 = vmatpush.bf16.msra.mxu0 %v2318
  %2619 = vmatpush.bf16.msra.mxu0 %v2316
  %2620 = vmatpush.bf16.msra.mxu0 %v2314
  %2621 = vmatpush.bf16.msra.mxu0 %v2312
  %2622 = vmatpush.bf16.msra.mxu0 %v2310
  %2623 = vmatpush.bf16.msra.mxu0 %v2308
  %2624 = vmatmul.bf16.gmra.mxu0 %v1748
  %v2625 = vpop.f32.mrf.mxu0
  %v2626 = vadd.f32 %v2613, %v2625
  %v2627 = vpop.f32.mrf.mxu0
  %2628 = vdwg.mxu0
  %2629 = vmatpush.bf16.msra.mxu0 %v2338
  %2630 = vmatpush.bf16.msra.mxu0 %v2336
  %2631 = vmatpush.bf16.msra.mxu0 %v2334
  %2632 = vmatpush.bf16.msra.mxu0 %v2332
  %2633 = vmatpush.bf16.msra.mxu0 %v2330
  %2634 = vmatpush.bf16.msra.mxu0 %v2328
  %2635 = vmatpush.bf16.msra.mxu0 %v2326
  %2636 = vmatpush.bf16.msra.mxu0 %v2324
  %2637 = vmatmul.bf16.gmra.mxu0 %v1749
  %v2638 = vpop.f32.mrf.mxu0
  %v2639 = vadd.f32 %v2626, %v2638
  %v2640 = vpop.f32.mrf.mxu0
  %2641 = vdwg.mxu0
  %2642 = vmatpush.bf16.msra.mxu0 %v2354
  %2643 = vmatpush.bf16.msra.mxu0 %v2352
  %2644 = vmatpush.bf16.msra.mxu0 %v2350
  %2645 = vmatpush.bf16.msra.mxu0 %v2348
  %2646 = vmatpush.bf16.msra.mxu0 %v2346
  %2647 = vmatpush.bf16.msra.mxu0 %v2344
  %2648 = vmatpush.bf16.msra.mxu0 %v2342
  %2649 = vmatpush.bf16.msra.mxu0 %v2340
  %2650 = vmatmul.bf16.gmra.mxu0 %v1750
  %v2651 = vpop.f32.mrf.mxu0
  %v2652 = vadd.f32 %v2639, %v2651
  %v2653 = vpop.f32.mrf.mxu0
  %2654 = vdwg.mxu0
  %2655 = vmatpush.bf16.msra.mxu0 %v2370
  %2656 = vmatpush.bf16.msra.mxu0 %v2368
  %2657 = vmatpush.bf16.msra.mxu0 %v2366
  %2658 = vmatpush.bf16.msra.mxu0 %v2364
  %2659 = vmatpush.bf16.msra.mxu0 %v2362
  %2660 = vmatpush.bf16.msra.mxu0 %v2360
  %2661 = vmatpush.bf16.msra.mxu0 %v2358
  %2662 = vmatpush.bf16.msra.mxu0 %v2356
  %2663 = vmatmul.bf16.gmra.mxu0 %v1751
  %v2664 = vpop.f32.mrf.mxu0
  %v2665 = vadd.f32 %v2652, %v2664
  %v2666 = vpop.f32.mrf.mxu0
  %2667 = vdwg.mxu0
  %2668 = vmatpush.bf16.msra.mxu0 %v2386
  %2669 = vmatpush.bf16.msra.mxu0 %v2384
  %2670 = vmatpush.bf16.msra.mxu0 %v2382
  %2671 = vmatpush.bf16.msra.mxu0 %v2380
  %2672 = vmatpush.bf16.msra.mxu0 %v2378
  %2673 = vmatpush.bf16.msra.mxu0 %v2376
  %2674 = vmatpush.bf16.msra.mxu0 %v2374
  %2675 = vmatpush.bf16.msra.mxu0 %v2372
  %2676 = vmatmul.bf16.gmra.mxu0 %v1752
  %v2677 = vpop.f32.mrf.mxu0
  %v2678 = vadd.f32 %v2665, %v2677
  %v2679 = vpop.f32.mrf.mxu0
  %2680 = vdwg.mxu0
  %2681 = vmatpush.bf16.msra.mxu0 %v2402
  %2682 = vmatpush.bf16.msra.mxu0 %v2400
  %2683 = vmatpush.bf16.msra.mxu0 %v2398
  %2684 = vmatpush.bf16.msra.mxu0 %v2396
  %2685 = vmatpush.bf16.msra.mxu0 %v2394
  %2686 = vmatpush.bf16.msra.mxu0 %v2392
  %2687 = vmatpush.bf16.msra.mxu0 %v2390
  %2688 = vmatpush.bf16.msra.mxu0 %v2388
  %2689 = vmatmul.bf16.gmra.mxu0 %v1753
  %v2690 = vpop.f32.mrf.mxu0
  %v2691 = vadd.f32 %v2678, %v2690
  %v2692 = vpop.f32.mrf.mxu0
  %2693 = vdwg.mxu0
  %2694 = vmatpush.bf16.msra.mxu0 %v2259
  %2695 = vmatpush.bf16.msra.mxu0 %v2257
  %2696 = vmatpush.bf16.msra.mxu0 %v2255
  %2697 = vmatpush.bf16.msra.mxu0 %v2253
  %2698 = vmatpush.bf16.msra.mxu0 %v2251
  %2699 = vmatpush.bf16.msra.mxu0 %v2249
  %2700 = vmatpush.bf16.msra.mxu0 %v2247
  %2701 = vmatpush.bf16.msra.mxu0 %v2245
  %2702 = vmatmul.bf16.gmra.mxu0 %v1744
  %v2703 = vpop.f32.mrf.mxu0
  %v2704 = vadd.f32 %v1726, %v2703
  %v2705 = vpop.f32.mrf.mxu0
  %2706 = vdwg.mxu0
  %2707 = vmatpush.bf16.msra.mxu0 %v2275
  %2708 = vmatpush.bf16.msra.mxu0 %v2273
  %2709 = vmatpush.bf16.msra.mxu0 %v2271
  %2710 = vmatpush.bf16.msra.mxu0 %v2269
  %2711 = vmatpush.bf16.msra.mxu0 %v2267
  %2712 = vmatpush.bf16.msra.mxu0 %v2265
  %2713 = vmatpush.bf16.msra.mxu0 %v2263
  %2714 = vmatpush.bf16.msra.mxu0 %v2261
  %2715 = vmatmul.bf16.gmra.mxu0 %v1745
  %v2716 = vpop.f32.mrf.mxu0
  %v2717 = vadd.f32 %v2704, %v2716
  %v2718 = vpop.f32.mrf.mxu0
  %2719 = vdwg.mxu0
  %2720 = vmatpush.bf16.msra.mxu0 %v2291
  %2721 = vmatpush.bf16.msra.mxu0 %v2289
  %2722 = vmatpush.bf16.msra.mxu0 %v2287
  %2723 = vmatpush.bf16.msra.mxu0 %v2285
  %2724 = vmatpush.bf16.msra.mxu0 %v2283
  %2725 = vmatpush.bf16.msra.mxu0 %v2281
  %2726 = vmatpush.bf16.msra.mxu0 %v2279
  %2727 = vmatpush.bf16.msra.mxu0 %v2277
  %2728 = vmatmul.bf16.gmra.mxu0 %v1746
  %v2729 = vpop.f32.mrf.mxu0
  %v2730 = vadd.f32 %v2717, %v2729
  %v2731 = vpop.f32.mrf.mxu0
  %2732 = vdwg.mxu0
  %2733 = vmatpush.bf16.msra.mxu0 %v2307
  %2734 = vmatpush.bf16.msra.mxu0 %v2305
  %2735 = vmatpush.bf16.msra.mxu0 %v2303
  %2736 = vmatpush.bf16.msra.mxu0 %v2301
  %2737 = vmatpush.bf16.msra.mxu0 %v2299
  %2738 = vmatpush.bf16.msra.mxu0 %v2297
  %2739 = vmatpush.bf16.msra.mxu0 %v2295
  %2740 = vmatpush.bf16.msra.mxu0 %v2293
  %2741 = vmatmul.bf16.gmra.mxu0 %v1747
  %v2742 = vpop.f32.mrf.mxu0
  %v2743 = vadd.f32 %v2730, %v2742
  %v2744 = vpop.f32.mrf.mxu0
  %2745 = vdwg.mxu0
  %2746 = vmatpush.bf16.msra.mxu0 %v2323
  %2747 = vmatpush.bf16.msra.mxu0 %v2321
  %2748 = vmatpush.bf16.msra.mxu0 %v2319
  %2749 = vmatpush.bf16.msra.mxu0 %v2317
  %2750 = vmatpush.bf16.msra.mxu0 %v2315
  %2751 = vmatpush.bf16.msra.mxu0 %v2313
  %2752 = vmatpush.bf16.msra.mxu0 %v2311
  %2753 = vmatpush.bf16.msra.mxu0 %v2309
  %2754 = vmatmul.bf16.gmra.mxu0 %v1748
  %v2755 = vpop.f32.mrf.mxu0
  %v2756 = vadd.f32 %v2743, %v2755
  %v2757 = vpop.f32.mrf.mxu0
  %2758 = vdwg.mxu0
  %2759 = vmatpush.bf16.msra.mxu0 %v2339
  %2760 = vmatpush.bf16.msra.mxu0 %v2337
  %2761 = vmatpush.bf16.msra.mxu0 %v2335
  %2762 = vmatpush.bf16.msra.mxu0 %v2333
  %2763 = vmatpush.bf16.msra.mxu0 %v2331
  %2764 = vmatpush.bf16.msra.mxu0 %v2329
  %2765 = vmatpush.bf16.msra.mxu0 %v2327
  %2766 = vmatpush.bf16.msra.mxu0 %v2325
  %2767 = vmatmul.bf16.gmra.mxu0 %v1749
  %v2768 = vpop.f32.mrf.mxu0
  %v2769 = vadd.f32 %v2756, %v2768
  %v2770 = vpop.f32.mrf.mxu0
  %2771 = vdwg.mxu0
  %2772 = vmatpush.bf16.msra.mxu0 %v2355
  %2773 = vmatpush.bf16.msra.mxu0 %v2353
  %2774 = vmatpush.bf16.msra.mxu0 %v2351
  %2775 = vmatpush.bf16.msra.mxu0 %v2349
  %2776 = vmatpush.bf16.msra.mxu0 %v2347
  %2777 = vmatpush.bf16.msra.mxu0 %v2345
  %2778 = vmatpush.bf16.msra.mxu0 %v2343
  %2779 = vmatpush.bf16.msra.mxu0 %v2341
  %2780 = vmatmul.bf16.gmra.mxu0 %v1750
  %v2781 = vpop.f32.mrf.mxu0
  %v2782 = vadd.f32 %v2769, %v2781
  %v2783 = vpop.f32.mrf.mxu0
  %2784 = vdwg.mxu0
  %2785 = vmatpush.bf16.msra.mxu0 %v2371
  %2786 = vmatpush.bf16.msra.mxu0 %v2369
  %2787 = vmatpush.bf16.msra.mxu0 %v2367
  %2788 = vmatpush.bf16.msra.mxu0 %v2365
  %2789 = vmatpush.bf16.msra.mxu0 %v2363
  %2790 = vmatpush.bf16.msra.mxu0 %v2361
  %2791 = vmatpush.bf16.msra.mxu0 %v2359
  %2792 = vmatpush.bf16.msra.mxu0 %v2357
  %2793 = vmatmul.bf16.gmra.mxu0 %v1751
  %v2794 = vpop.f32.mrf.mxu0
  %v2795 = vadd.f32 %v2782, %v2794
  %v2796 = vpop.f32.mrf.mxu0
  %2797 = vdwg.mxu0
  %2798 = vmatpush.bf16.msra.mxu0 %v2387
  %2799 = vmatpush.bf16.msra.mxu0 %v2385
  %2800 = vmatpush.bf16.msra.mxu0 %v2383
  %2801 = vmatpush.bf16.msra.mxu0 %v2381
  %2802 = vmatpush.bf16.msra.mxu0 %v2379
  %2803 = vmatpush.bf16.msra.mxu0 %v2377
  %2804 = vmatpush.bf16.msra.mxu0 %v2375
  %2805 = vmatpush.bf16.msra.mxu0 %v2373
  %2806 = vmatmul.bf16.gmra.mxu0 %v1752
  %v2807 = vpop.f32.mrf.mxu0
  %v2808 = vadd.f32 %v2795, %v2807
  %v2809 = vpop.f32.mrf.mxu0
  %2810 = vdwg.mxu0
  %2811 = vmatpush.bf16.msra.mxu0 %v2403
  %2812 = vmatpush.bf16.msra.mxu0 %v2401
  %2813 = vmatpush.bf16.msra.mxu0 %v2399
  %2814 = vmatpush.bf16.msra.mxu0 %v2397
  %2815 = vmatpush.bf16.msra.mxu0 %v2395
  %2816 = vmatpush.bf16.msra.mxu0 %v2393
  %2817 = vmatpush.bf16.msra.mxu0 %v2391
  %2818 = vmatpush.bf16.msra.mxu0 %v2389
  %2819 = vmatmul.bf16.gmra.mxu0 %v1753
  %v2820 = vpop.f32.mrf.mxu0
  %v2821 = vadd.f32 %v2808, %v2820
  %v2822 = vpop.f32.mrf.mxu0
  %2823 = vdwg.mxu0
  %v2824 = vld [vmem:[%s6] sm:$0x3]
  %v2826 = vperm.slane %v2824, 0
  %v2827 = vperm.slane %v2824, 1
  %v2830 = vadd.f32 %v2691, %v2826
  %v2831 = vadd.f32 %v2821, %v2827
  %v2832 = vmax.f32 %v2830, 0.0
  %v2833 = vmax.f32 %v2831, 0.0
  %v2834 = vpack.c.bf16 %v2832, %v2832
  %v2835 = vpack.c.bf16 %v2833, %v2833
  %v2836 = vld [vmem:[%s7] sm:$0xff]
  %v2837 = vld [vmem:[%s7 + $0x8] sm:$0xf]
  %v2838 = vld [vmem:[%s7 + $0xc] sm:$0xff]
  %v2839 = vld [vmem:[%s7 + $0x14] sm:$0xf]
  %v2840 = vld [vmem:[%s7 + $0x18] sm:$0xff]
  %v2841 = vld [vmem:[%s7 + $0x20] sm:$0xf]
  %v2842 = vld [vmem:[%s7 + $0x24] sm:$0xff]
  %v2843 = vld [vmem:[%s7 + $0x2c] sm:$0xf]
  %v2844 = vld [vmem:[%s7 + $0x30] sm:$0xff]
  %v2845 = vld [vmem:[%s7 + $0x38] sm:$0xf]
  %v2846 = vld [vmem:[%s7 + $0x3c] sm:$0xff]
  %v2847 = vld [vmem:[%s7 + $0x44] sm:$0xf]
  %v2848 = vld [vmem:[%s7 + $0x48] sm:$0xff]
  %v2849 = vld [vmem:[%s7 + $0x50] sm:$0xf]
  %v2850 = vld [vmem:[%s7 + $0x54] sm:$0xff]
  %v2851 = vld [vmem:[%s7 + $0x5c] sm:$0xf]
  %v2852 = vld [vmem:[%s7 + $0x60] sm:$0xff]
  %v2853 = vld [vmem:[%s7 + $0x68] sm:$0xf]
  %v2854 = vld [vmem:[%s7 + $0x6c] sm:$0xff]
  %v2855 = vld [vmem:[%s7 + $0x74] sm:$0xf]
  %v2856 = vld [vmem:[%s7 + $0x78] sm:$0xff]
  %v2857 = vld [vmem:[%s7 + $0x80] sm:$0xf]
  %v2858 = vld [vmem:[%s7 + $0x84] sm:$0xff]
  %v2859 = vld [vmem:[%s7 + $0x8c] sm:$0xf]
  %v2860 = vld [vmem:[%s7 + $0x90] sm:$0xff]
  %v2861 = vld [vmem:[%s7 + $0x98] sm:$0xf]
  %v2862 = vld [vmem:[%s7 + $0x9c] sm:$0xff]
  %v2863 = vld [vmem:[%s7 + $0xa4] sm:$0xf]
  %v2864 = vld [vmem:[%s7 + $0xa8] sm:$0xff]
  %v2865 = vld [vmem:[%s7 + $0xb0] sm:$0xf]
  %v2866 = vld [vmem:[%s7 + $0xb4] sm:$0xff]
  %v2867 = vld [vmem:[%s7 + $0xbc] sm:$0xf]
  %v2868 = vld [vmem:[%s7 + $0xc0] sm:$0xff]
  %v2869 = vld [vmem:[%s7 + $0xc8] sm:$0xf]
  %v2870 = vld [vmem:[%s7 + $0xcc] sm:$0xff]
  %v2871 = vld [vmem:[%s7 + $0xd4] sm:$0xf]
  %v2872 = vld [vmem:[%s7 + $0xd8] sm:$0xff]
  %v2873 = vld [vmem:[%s7 + $0xe0] sm:$0xf]
  %v2874 = vld [vmem:[%s7 + $0xe4] sm:$0xff]
  %v2875 = vld [vmem:[%s7 + $0xec] sm:$0xf]
  %v2876 = vld [vmem:[%s7 + $0xf0] sm:$0xff]
  %v2877 = vld [vmem:[%s7 + $0xf8] sm:$0xf]
  %v2878 = vld [vmem:[%s7 + $0xfc] sm:$0xff]
  %v2879 = vld [vmem:[%s7 + $0x104] sm:$0xf]
  %v2880 = vld [vmem:[%s7 + $0x108] sm:$0xff]
  %v2881 = vld [vmem:[%s7 + $0x110] sm:$0xf]
  %v2882 = vld [vmem:[%s7 + $0x114] sm:$0xff]
  %v2883 = vld [vmem:[%s7 + $0x11c] sm:$0xf]
  %v2884 = vld [vmem:[%s7 + $0x120] sm:$0xff]
  %v2885 = vld [vmem:[%s7 + $0x128] sm:$0xf]
  %v2886 = vld [vmem:[%s7 + $0x12c] sm:$0xff]
  %v2887 = vld [vmem:[%s7 + $0x134] sm:$0xf]
  %v2888 = vld [vmem:[%s7 + $0x138] sm:$0xff]
  %v2889 = vld [vmem:[%s7 + $0x140] sm:$0xf]
  %v2890 = vld [vmem:[%s7 + $0x144] sm:$0xff]
  %v2891 = vld [vmem:[%s7 + $0x14c] sm:$0xf]
  %v2892 = vld [vmem:[%s7 + $0x150] sm:$0xff]
  %v2893 = vld [vmem:[%s7 + $0x158] sm:$0xf]
  %v2894 = vld [vmem:[%s7 + $0x15c] sm:$0xff]
  %v2895 = vld [vmem:[%s7 + $0x164] sm:$0xf]
  %v2896 = vld [vmem:[%s7 + $0x168] sm:$0xff]
  %v2897 = vld [vmem:[%s7 + $0x170] sm:$0xf]
  %v2898 = vld [vmem:[%s7 + $0x174] sm:$0xff]
  %v2899 = vld [vmem:[%s7 + $0x17c] sm:$0xf]
  %v2900 = vld [vmem:[%s8] sm:$0x7]
  %v2902 = vperm.slane %v2900, 0
  %v2903 = vperm.slane %v2900, 1
  %v2904 = vperm.slane %v2900, 2
  %v2972 = vunpack.c.l.b16 %v2836
  %v2973 = vunpack.c.h.b16 %v2836
  %v2974 = vunpack.c.l.b16 %v2837
  %v2975 = vunpack.c.l.b16 %v2838
  %v2976 = vunpack.c.h.b16 %v2838
  %v2977 = vunpack.c.l.b16 %v2839
  %v2978 = vunpack.c.l.b16 %v2840
  %v2979 = vunpack.c.h.b16 %v2840
  %v2980 = vunpack.c.l.b16 %v2841
  %v2981 = vunpack.c.l.b16 %v2842
  %v2982 = vunpack.c.h.b16 %v2842
  %v2983 = vunpack.c.l.b16 %v2843
  %v2984 = vunpack.c.l.b16 %v2844
  %v2985 = vunpack.c.h.b16 %v2844
  %v2986 = vunpack.c.l.b16 %v2845
  %v2987 = vunpack.c.l.b16 %v2846
  %v2988 = vunpack.c.h.b16 %v2846
  %v2989 = vunpack.c.l.b16 %v2847
  %v2990 = vunpack.c.l.b16 %v2848
  %v2991 = vunpack.c.h.b16 %v2848
  %v2992 = vunpack.c.l.b16 %v2849
  %v2993 = vunpack.c.l.b16 %v2850
  %v2994 = vunpack.c.h.b16 %v2850
  %v2995 = vunpack.c.l.b16 %v2851
  %v2996 = vunpack.c.l.b16 %v2852
  %v2997 = vunpack.c.h.b16 %v2852
  %v2998 = vunpack.c.l.b16 %v2853
  %v2999 = vunpack.c.l.b16 %v2854
  %v3000 = vunpack.c.h.b16 %v2854
  %v3001 = vunpack.c.l.b16 %v2855
  %v3002 = vunpack.c.l.b16 %v2856
  %v3003 = vunpack.c.h.b16 %v2856
  %v3004 = vunpack.c.l.b16 %v2857
  %v3005 = vunpack.c.l.b16 %v2858
  %v3006 = vunpack.c.h.b16 %v2858
  %v3007 = vunpack.c.l.b16 %v2859
  %v3008 = vunpack.c.l.b16 %v2860
  %v3009 = vunpack.c.h.b16 %v2860
  %v3010 = vunpack.c.l.b16 %v2861
  %v3011 = vunpack.c.l.b16 %v2862
  %v3012 = vunpack.c.h.b16 %v2862
  %v3013 = vunpack.c.l.b16 %v2863
  %v3014 = vunpack.c.l.b16 %v2864
  %v3015 = vunpack.c.h.b16 %v2864
  %v3016 = vunpack.c.l.b16 %v2865
  %v3017 = vunpack.c.l.b16 %v2866
  %v3018 = vunpack.c.h.b16 %v2866
  %v3019 = vunpack.c.l.b16 %v2867
  %v3020 = vunpack.c.l.b16 %v2868
  %v3021 = vunpack.c.h.b16 %v2868
  %v3022 = vunpack.c.l.b16 %v2869
  %v3023 = vunpack.c.l.b16 %v2870
  %v3024 = vunpack.c.h.b16 %v2870
  %v3025 = vunpack.c.l.b16 %v2871
  %v3026 = vunpack.c.l.b16 %v2872
  %v3027 = vunpack.c.h.b16 %v2872
  %v3028 = vunpack.c.l.b16 %v2873
  %v3029 = vunpack.c.l.b16 %v2874
  %v3030 = vunpack.c.h.b16 %v2874
  %v3031 = vunpack.c.l.b16 %v2875
  %v3032 = vunpack.c.l.b16 %v2876
  %v3033 = vunpack.c.h.b16 %v2876
  %v3034 = vunpack.c.l.b16 %v2877
  %v3035 = vunpack.c.l.b16 %v2878
  %v3036 = vunpack.c.h.b16 %v2878
  %v3037 = vunpack.c.l.b16 %v2879
  %v3038 = vunpack.c.l.b16 %v2880
  %v3039 = vunpack.c.h.b16 %v2880
  %v3040 = vunpack.c.l.b16 %v2881
  %v3041 = vunpack.c.l.b16 %v2882
  %v3042 = vunpack.c.h.b16 %v2882
  %v3043 = vunpack.c.l.b16 %v2883
  %v3044 = vunpack.c.l.b16 %v2884
  %v3045 = vunpack.c.h.b16 %v2884
  %v3046 = vunpack.c.l.b16 %v2885
  %v3047 = vunpack.c.l.b16 %v2886
  %v3048 = vunpack.c.h.b16 %v2886
  %v3049 = vunpack.c.l.b16 %v2887
  %v3050 = vunpack.c.l.b16 %v2888
  %v3051 = vunpack.c.h.b16 %v2888
  %v3052 = vunpack.c.l.b16 %v2889
  %v3053 = vunpack.c.l.b16 %v2890
  %v3054 = vunpack.c.h.b16 %v2890
  %v3055 = vunpack.c.l.b16 %v2891
  %v3056 = vunpack.c.l.b16 %v2892
  %v3057 = vunpack.c.h.b16 %v2892
  %v3058 = vunpack.c.l.b16 %v2893
  %v3059 = vunpack.c.l.b16 %v2894
  %v3060 = vunpack.c.h.b16 %v2894
  %v3061 = vunpack.c.l.b16 %v2895
  %v3062 = vunpack.c.l.b16 %v2896
  %v3063 = vunpack.c.h.b16 %v2896
  %v3064 = vunpack.c.l.b16 %v2897
  %v3065 = vunpack.c.l.b16 %v2898
  %v3066 = vunpack.c.h.b16 %v2898
  %v3067 = vunpack.c.l.b16 %v2899
  %v3068 = vpack.c.b16 %v2975, %v2972
  %v3069 = vpack.c.b16 %v2976, %v2973
  %v3070 = vpack.c.b16 %v2977, %v2974
  %v3071 = vpack.c.b16 %v2981, %v2978
  %v3072 = vpack.c.b16 %v2982, %v2979
  %v3073 = vpack.c.b16 %v2983, %v2980
  %v3074 = vpack.c.b16 %v2987, %v2984
  %v3075 = vpack.c.b16 %v2988, %v2985
  %v3076 = vpack.c.b16 %v2989, %v2986
  %v3077 = vpack.c.b16 %v2993, %v2990
  %v3078 = vpack.c.b16 %v2994, %v2991
  %v3079 = vpack.c.b16 %v2995, %v2992
  %v3080 = vpack.c.b16 %v2999, %v2996
  %v3081 = vpack.c.b16 %v3000, %v2997
  %v3082 = vpack.c.b16 %v3001, %v2998
  %v3083 = vpack.c.b16 %v3005, %v3002
  %v3084 = vpack.c.b16 %v3006, %v3003
  %v3085 = vpack.c.b16 %v3007, %v3004
  %v3086 = vpack.c.b16 %v3011, %v3008
  %v3087 = vpack.c.b16 %v3012, %v3009
  %v3088 = vpack.c.b16 %v3013, %v3010
  %v3089 = vpack.c.b16 %v3017, %v3014
  %v3090 = vpack.c.b16 %v3018, %v3015
  %v3091 = vpack.c.b16 %v3019, %v3016
  %v3092 = vpack.c.b16 %v3023, %v3020
  %v3093 = vpack.c.b16 %v3024, %v3021
  %v3094 = vpack.c.b16 %v3025, %v3022
  %v3095 = vpack.c.b16 %v3029, %v3026
  %v3096 = vpack.c.b16 %v3030, %v3027
  %v3097 = vpack.c.b16 %v3031, %v3028
  %v3098 = vpack.c.b16 %v3035, %v3032
  %v3099 = vpack.c.b16 %v3036, %v3033
  %v3100 = vpack.c.b16 %v3037, %v3034
  %v3101 = vpack.c.b16 %v3041, %v3038
  %v3102 = vpack.c.b16 %v3042, %v3039
  %v3103 = vpack.c.b16 %v3043, %v3040
  %v3104 = vpack.c.b16 %v3047, %v3044
  %v3105 = vpack.c.b16 %v3048, %v3045
  %v3106 = vpack.c.b16 %v3049, %v3046
  %v3107 = vpack.c.b16 %v3053, %v3050
  %v3108 = vpack.c.b16 %v3054, %v3051
  %v3109 = vpack.c.b16 %v3055, %v3052
  %v3110 = vpack.c.b16 %v3059, %v3056
  %v3111 = vpack.c.b16 %v3060, %v3057
  %v3112 = vpack.c.b16 %v3061, %v3058
  %v3113 = vpack.c.b16 %v3065, %v3062
  %v3114 = vpack.c.b16 %v3066, %v3063
  %v3115 = vpack.c.b16 %v3067, %v3064
  %3164 = vmatpush.bf16.msra.mxu0 %v3089
  %3165 = vmatpush.bf16.msra.mxu0 %v3086
  %3166 = vmatpush.bf16.msra.mxu0 %v3083
  %3167 = vmatpush.bf16.msra.mxu0 %v3080
  %3168 = vmatpush.bf16.msra.mxu0 %v3077
  %3169 = vmatpush.bf16.msra.mxu0 %v3074
  %3170 = vmatpush.bf16.msra.mxu0 %v3071
  %3171 = vmatpush.bf16.msra.mxu0 %v3068
  %3172 = vmatmul.bf16.gmra.mxu0 %v2834
  %v3173 = vpop.f32.mrf.mxu0
  %v3174 = vadd.f32 %v2902, %v3173
  %v3175 = vpop.f32.mrf.mxu0
  %3176 = vdwg.mxu0
  %3177 = vmatpush.bf16.msra.mxu0 %v3113
  %3178 = vmatpush.bf16.msra.mxu0 %v3110
  %3179 = vmatpush.bf16.msra.mxu0 %v3107
  %3180 = vmatpush.bf16.msra.mxu0 %v3104
  %3181 = vmatpush.bf16.msra.mxu0 %v3101
  %3182 = vmatpush.bf16.msra.mxu0 %v3098
  %3183 = vmatpush.bf16.msra.mxu0 %v3095
  %3184 = vmatpush.bf16.msra.mxu0 %v3092
  %3185 = vmatmul.bf16.gmra.mxu0 %v2835
  %v3186 = vpop.f32.mrf.mxu0
  %v3187 = vadd.f32 %v3174, %v3186
  %v3188 = vpop.f32.mrf.mxu0
  %3189 = vdwg.mxu0
  %3190 = vmatpush.bf16.msra.mxu0 %v3090
  %3191 = vmatpush.bf16.msra.mxu0 %v3087
  %3192 = vmatpush.bf16.msra.mxu0 %v3084
  %3193 = vmatpush.bf16.msra.mxu0 %v3081
  %3194 = vmatpush.bf16.msra.mxu0 %v3078
  %3195 = vmatpush.bf16.msra.mxu0 %v3075
  %3196 = vmatpush.bf16.msra.mxu0 %v3072
  %3197 = vmatpush.bf16.msra.mxu0 %v3069
  %3198 = vmatmul.bf16.gmra.mxu0 %v2834
  %v3199 = vpop.f32.mrf.mxu0
  %v3200 = vadd.f32 %v2903, %v3199
  %v3201 = vpop.f32.mrf.mxu0
  %3202 = vdwg.mxu0
  %3203 = vmatpush.bf16.msra.mxu0 %v3114
  %3204 = vmatpush.bf16.msra.mxu0 %v3111
  %3205 = vmatpush.bf16.msra.mxu0 %v3108
  %3206 = vmatpush.bf16.msra.mxu0 %v3105
  %3207 = vmatpush.bf16.msra.mxu0 %v3102
  %3208 = vmatpush.bf16.msra.mxu0 %v3099
  %3209 = vmatpush.bf16.msra.mxu0 %v3096
  %3210 = vmatpush.bf16.msra.mxu0 %v3093
  %3211 = vmatmul.bf16.gmra.mxu0 %v2835
  %v3212 = vpop.f32.mrf.mxu0
  %v3213 = vadd.f32 %v3200, %v3212
  %v3214 = vpop.f32.mrf.mxu0
  %3215 = vdwg.mxu0
  %3216 = vmatpush.bf16.msra.mxu0 %v3091
  %3217 = vmatpush.bf16.msra.mxu0 %v3088
  %3218 = vmatpush.bf16.msra.mxu0 %v3085
  %3219 = vmatpush.bf16.msra.mxu0 %v3082
  %3220 = vmatpush.bf16.msra.mxu0 %v3079
  %3221 = vmatpush.bf16.msra.mxu0 %v3076
  %3222 = vmatpush.bf16.msra.mxu0 %v3073
  %3223 = vmatpush.bf16.msra.mxu0 %v3070
  %3224 = vmatmul.bf16.gmra.mxu0 %v2834
  %v3225 = vpop.f32.mrf.mxu0
  %v3226 = vadd.f32 %v2904, %v3225
  %v3227 = vpop.f32.mrf.mxu0
  %3228 = vdwg.mxu0
  %3229 = vmatpush.bf16.msra.mxu0 %v3115
  %3230 = vmatpush.bf16.msra.mxu0 %v3112
  %3231 = vmatpush.bf16.msra.mxu0 %v3109
  %3232 = vmatpush.bf16.msra.mxu0 %v3106
  %3233 = vmatpush.bf16.msra.mxu0 %v3103
  %3234 = vmatpush.bf16.msra.mxu0 %v3100
  %3235 = vmatpush.bf16.msra.mxu0 %v3097
  %3236 = vmatpush.bf16.msra.mxu0 %v3094
  %3237 = vmatmul.bf16.gmra.mxu0 %v2835
  %v3238 = vpop.f32.mrf.mxu0
  %v3239 = vadd.f32 %v3226, %v3238
  %v3240 = vpop.f32.mrf.mxu0
  %3241 = vdwg.mxu0
  %v3242 = vxor.u32 %v3187, 2147483648
  %v3243 = vmul.f32 %v3242, 1.442695
  %v3244 = vpow.pop %v3243
  %v3245 = vadd.f32 %v3244, 1.0
  %v3246 = vrcp.pop %v3245
  %v3247 = vmul.f32 %v3245, %v3246
  %v3248 = vsub.f32 1.0, %v3247
  %v3249 = vmul.f32 %v3246, %v3248
  %v3250 = vadd.f32 %v3246, %v3249
  %vm3251 = vweird.f32 %v3245
  %vm3252 = vweird.f32 %v3246
  %vm3253 = vmor %vm3251, %vm3252
  %v3254 = vsel %vm3253, %v3246, %v3250
  %v3255 = vand.u32 2147483647, %v3245
  %vm3256 = vcmp.eq.f32.partialorder %v3255, 8.507059e+37
  %v3257 = vand.u32 %v3245, 2147483648
  %v3258 = vor.u32 1.1754944e-38, %v3257
  %v3259 = vsel %vm3256, %v3258, %v3254
  %v3260 = vmul.f32 1.0, %v3259
  %v3261 = vtanh.pop %v3213
  %v3262 = vxor.u32 %v3239, 2147483648
  %v3263 = vmul.f32 %v3262, 1.442695
  %v3264 = vpow.pop %v3263
  %v3265 = vadd.f32 %v3264, 1.0
  %v3266 = vrcp.pop %v3265
  %v3267 = vmul.f32 %v3265, %v3266
  %v3268 = vsub.f32 1.0, %v3267
  %v3269 = vmul.f32 %v3266, %v3268
  %v3270 = vadd.f32 %v3266, %v3269
  %vm3271 = vweird.f32 %v3265
  %vm3272 = vweird.f32 %v3266
  %vm3273 = vmor %vm3271, %vm3272
  %v3274 = vsel %vm3273, %v3266, %v3270
  %v3275 = vand.u32 2147483647, %v3265
  %vm3276 = vcmp.eq.f32.partialorder %v3275, 8.507059e+37
  %v3277 = vand.u32 %v3265, 2147483648
  %v3278 = vor.u32 1.1754944e-38, %v3277
  %v3279 = vsel %vm3276, %v3278, %v3274
  %v3280 = vmul.f32 1.0, %v3279
  %v3281 = vmul.f32 %v3260, %v3261
  %v3282 = vtanh.pop %v3281
  %v3283 = vmul.f32 %v3280, %v3282
  %v3284 = vmax.f32 %v3283, 0.0
  %v3285 = vld [vmem:[%s9] sm:$0xff]
  %v3286 = vld [vmem:[%s9 + $0x8] sm:$0xff]
  %v3287 = vld [vmem:[%s9 + $0x10] sm:$0xff]
  %v3288 = vld [vmem:[%s9 + $0x18] sm:$0xff]
  %v3289 = vld [vmem:[%s9 + $0x20] sm:$0xff]
  %v3290 = vld [vmem:[%s9 + $0x28] sm:$0xff]
  %v3291 = vld [vmem:[%s9 + $0x30] sm:$0xff]
  %v3292 = vld [vmem:[%s9 + $0x38] sm:$0xff]
  %v3293 = vld [vmem:[%s9 + $0x40] sm:$0xff]
  %v3294 = vld [vmem:[%s9 + $0x48] sm:$0xff]
  %v3295 = vld [vmem:[%s9 + $0x50] sm:$0xff]
  %v3296 = vld [vmem:[%s9 + $0x58] sm:$0xff]
  %v3297 = vld [vmem:[%s9 + $0x60] sm:$0xff]
  %v3298 = vld [vmem:[%s9 + $0x68] sm:$0xff]
  %v3299 = vld [vmem:[%s9 + $0x70] sm:$0xff]
  %v3300 = vld [vmem:[%s9 + $0x78] sm:$0xff]
  %v3301 = vld [vmem:[%s9 + $0x80] sm:$0xff]
  %v3302 = vld [vmem:[%s9 + $0x88] sm:$0xff]
  %v3303 = vld [vmem:[%s9 + $0x90] sm:$0xff]
  %v3304 = vld [vmem:[%s9 + $0x98] sm:$0xff]
  %v3305 = vld [vmem:[%s9 + $0xa0] sm:$0xff]
  %v3306 = vld [vmem:[%s9 + $0xa8] sm:$0xff]
  %v3307 = vld [vmem:[%s9 + $0xb0] sm:$0xff]
  %v3308 = vld [vmem:[%s9 + $0xb8] sm:$0xff]
  %v3309 = vld [vmem:[%s9 + $0xc0] sm:$0xff]
  %v3310 = vld [vmem:[%s9 + $0xc8] sm:$0xff]
  %v3311 = vld [vmem:[%s9 + $0xd0] sm:$0xff]
  %v3312 = vld [vmem:[%s9 + $0xd8] sm:$0xff]
  %v3313 = vld [vmem:[%s9 + $0xe0] sm:$0xff]
  %v3314 = vld [vmem:[%s9 + $0xe8] sm:$0xff]
  %v3315 = vld [vmem:[%s9 + $0xf0] sm:$0xff]
  %v3316 = vld [vmem:[%s9 + $0xf8] sm:$0xff]
  %v3317 = vld [vmem:[%s9 + $0x100] sm:$0xff]
  %v3318 = vld [vmem:[%s9 + $0x108] sm:$0xff]
  %v3319 = vld [vmem:[%s9 + $0x110] sm:$0xff]
  %v3320 = vld [vmem:[%s9 + $0x118] sm:$0xff]
  %v3321 = vld [vmem:[%s9 + $0x120] sm:$0xff]
  %v3322 = vld [vmem:[%s9 + $0x128] sm:$0xff]
  %v3323 = vld [vmem:[%s9 + $0x130] sm:$0xff]
  %v3324 = vld [vmem:[%s9 + $0x138] sm:$0xff]
  %v3325 = vld [vmem:[%s9 + $0x140] sm:$0xff]
  %v3326 = vld [vmem:[%s9 + $0x148] sm:$0xff]
  %v3327 = vld [vmem:[%s9 + $0x150] sm:$0xff]
  %v3328 = vld [vmem:[%s9 + $0x158] sm:$0xff]
  %v3329 = vld [vmem:[%s9 + $0x160] sm:$0xff]
  %v3330 = vld [vmem:[%s9 + $0x168] sm:$0xff]
  %v3331 = vld [vmem:[%s9 + $0x170] sm:$0xff]
  %v3332 = vld [vmem:[%s9 + $0x178] sm:$0xff]
  %v3333 = vld [vmem:[%s10] sm:$0x7]
  %v3335 = vperm.slane %v3333, 0
  %v3336 = vperm.slane %v3333, 1
  %v3337 = vperm.slane %v3333, 2
  %3341 = vmatpush.msra.mxu0 %v3330
  %3342 = vmatpush.msra.mxu0 %v3327
  %3343 = vmatpush.msra.mxu0 %v3324
  %3344 = vmatpush.msra.mxu0 %v3321
  %3345 = vmatpush.msra.mxu0 %v3318
  %3346 = vmatpush.msra.mxu0 %v3315
  %3347 = vmatpush.msra.mxu0 %v3312
  %3348 = vmatpush.msra.mxu0 %v3309
  %3349 = vmatpush.msra.mxu0 %v3306
  %3350 = vmatpush.msra.mxu0 %v3303
  %3351 = vmatpush.msra.mxu0 %v3300
  %3352 = vmatpush.msra.mxu0 %v3297
  %3353 = vmatpush.msra.mxu0 %v3294
  %3354 = vmatpush.msra.mxu0 %v3291
  %3355 = vmatpush.msra.mxu0 %v3288
  %3356 = vmatpush.msra.mxu0 %v3285
  %3357 = vmatmul.f32.gmra.mxu0 %v3284
  %v3358 = vpop.f32.mrf.mxu0
  %v3359 = vadd.f32 %v3335, %v3358
  %3360 = vdwg.mxu0
  %3361 = vmatpush.msra.mxu0 %v3331
  %3362 = vmatpush.msra.mxu0 %v3328
  %3363 = vmatpush.msra.mxu0 %v3325
  %3364 = vmatpush.msra.mxu0 %v3322
  %3365 = vmatpush.msra.mxu0 %v3319
  %3366 = vmatpush.msra.mxu0 %v3316
  %3367 = vmatpush.msra.mxu0 %v3313
  %3368 = vmatpush.msra.mxu0 %v3310
  %3369 = vmatpush.msra.mxu0 %v3307
  %3370 = vmatpush.msra.mxu0 %v3304
  %3371 = vmatpush.msra.mxu0 %v3301
  %3372 = vmatpush.msra.mxu0 %v3298
  %3373 = vmatpush.msra.mxu0 %v3295
  %3374 = vmatpush.msra.mxu0 %v3292
  %3375 = vmatpush.msra.mxu0 %v3289
  %3376 = vmatpush.msra.mxu0 %v3286
  %3377 = vmatmul.f32.gmra.mxu0 %v3284
  %v3378 = vpop.f32.mrf.mxu0
  %v3379 = vadd.f32 %v3336, %v3378
  %3380 = vdwg.mxu0
  %3381 = vmatpush.msra.mxu0 %v3332
  %3382 = vmatpush.msra.mxu0 %v3329
  %3383 = vmatpush.msra.mxu0 %v3326
  %3384 = vmatpush.msra.mxu0 %v3323
  %3385 = vmatpush.msra.mxu0 %v3320
  %3386 = vmatpush.msra.mxu0 %v3317
  %3387 = vmatpush.msra.mxu0 %v3314
  %3388 = vmatpush.msra.mxu0 %v3311
  %3389 = vmatpush.msra.mxu0 %v3308
  %3390 = vmatpush.msra.mxu0 %v3305
  %3391 = vmatpush.msra.mxu0 %v3302
  %3392 = vmatpush.msra.mxu0 %v3299
  %3393 = vmatpush.msra.mxu0 %v3296
  %3394 = vmatpush.msra.mxu0 %v3293
  %3395 = vmatpush.msra.mxu0 %v3290
  %3396 = vmatpush.msra.mxu0 %v3287
  %3397 = vmatmul.f32.gmra.mxu0 %v3284
  %v3398 = vpop.f32.mrf.mxu0
  %v3399 = vadd.f32 %v3337, %v3398
  %3400 = vdwg.mxu0
  %v3401 = vxor.u32 %v3359, 2147483648
  %v3402 = vmul.f32 %v3401, 1.442695
  %v3403 = vpow.pop %v3402
  %v3404 = vadd.f32 %v3403, 1.0
  %v3405 = vrcp.pop %v3404
  %v3406 = vmul.f32 %v3404, %v3405
  %v3407 = vsub.f32 1.0, %v3406
  %v3408 = vmul.f32 %v3405, %v3407
  %v3409 = vadd.f32 %v3405, %v3408
  %vm3410 = vweird.f32 %v3404
  %vm3411 = vweird.f32 %v3405
  %vm3412 = vmor %vm3410, %vm3411
  %v3413 = vsel %vm3412, %v3405, %v3409
  %v3414 = vand.u32 2147483647, %v3404
  %vm3415 = vcmp.eq.f32.partialorder %v3414, 8.507059e+37
  %v3416 = vand.u32 %v3404, 2147483648
  %v3417 = vor.u32 1.1754944e-38, %v3416
  %v3418 = vsel %vm3415, %v3417, %v3413
  %v3419 = vmul.f32 1.0, %v3418
  %v3420 = vtanh.pop %v3379
  %v3421 = vxor.u32 %v3399, 2147483648
  %v3422 = vmul.f32 %v3421, 1.442695
  %v3423 = vpow.pop %v3422
  %v3424 = vadd.f32 %v3423, 1.0
  %v3425 = vrcp.pop %v3424
  %v3426 = vmul.f32 %v3424, %v3425
  %v3427 = vsub.f32 1.0, %v3426
  %v3428 = vmul.f32 %v3425, %v3427
  %v3429 = vadd.f32 %v3425, %v3428
  %vm3430 = vweird.f32 %v3424
  %vm3431 = vweird.f32 %v3425
  %vm3432 = vmor %vm3430, %vm3431
  %v3433 = vsel %vm3432, %v3425, %v3429
  %v3434 = vand.u32 2147483647, %v3424
  %vm3435 = vcmp.eq.f32.partialorder %v3434, 8.507059e+37
  %v3436 = vand.u32 %v3424, 2147483648
  %v3437 = vor.u32 1.1754944e-38, %v3436
  %v3438 = vsel %vm3435, %v3437, %v3433
  %v3439 = vmul.f32 1.0, %v3438
  %v3440 = vmul.f32 %v3419, %v3420
  %v3441 = vtanh.pop %v3440
  %v3442 = vmul.f32 %v3439, %v3441
  %v3443 = vmax.f32 %v3442, 0.0
  %v3444 = vld [vmem:[%s11] sm:$0xff]
  %v3445 = vld [vmem:[%s11 + $0x8] sm:$0xff]
  %v3446 = vld [vmem:[%s11 + $0x10] sm:$0xff]
  %v3447 = vld [vmem:[%s11 + $0x18] sm:$0xff]
  %v3448 = vld [vmem:[%s11 + $0x20] sm:$0xff]
  %v3449 = vld [vmem:[%s11 + $0x28] sm:$0xff]
  %v3450 = vld [vmem:[%s11 + $0x30] sm:$0xff]
  %v3451 = vld [vmem:[%s11 + $0x38] sm:$0xff]
  %v3452 = vld [vmem:[%s11 + $0x40] sm:$0xff]
  %v3453 = vld [vmem:[%s11 + $0x48] sm:$0xff]
  %v3454 = vld [vmem:[%s11 + $0x50] sm:$0xff]
  %v3455 = vld [vmem:[%s11 + $0x58] sm:$0xff]
  %v3456 = vld [vmem:[%s11 + $0x60] sm:$0xff]
  %v3457 = vld [vmem:[%s11 + $0x68] sm:$0xff]
  %v3458 = vld [vmem:[%s11 + $0x70] sm:$0xff]
  %v3459 = vld [vmem:[%s11 + $0x78] sm:$0xff]
  %v3460 = vld [vmem:[%s12] sm:$0x1]
  %v3462 = vperm.slane %v3460, 0
  %3464 = vmatpush.msra.mxu0 %v3459
  %3465 = vmatpush.msra.mxu0 %v3458
  %3466 = vmatpush.msra.mxu0 %v3457
  %3467 = vmatpush.msra.mxu0 %v3456
  %3468 = vmatpush.msra.mxu0 %v3455
  %3469 = vmatpush.msra.mxu0 %v3454
  %3470 = vmatpush.msra.mxu0 %v3453
  %3471 = vmatpush.msra.mxu0 %v3452
  %3472 = vmatpush.msra.mxu0 %v3451
  %3473 = vmatpush.msra.mxu0 %v3450
  %3474 = vmatpush.msra.mxu0 %v3449
  %3475 = vmatpush.msra.mxu0 %v3448
  %3476 = vmatpush.msra.mxu0 %v3447
  %3477 = vmatpush.msra.mxu0 %v3446
  %3478 = vmatpush.msra.mxu0 %v3445
  %3479 = vmatpush.msra.mxu0 %v3444
  %3480 = vmatmul.f32.gmra.mxu0 %v3443
  %v3481 = vpop.f32.mrf.mxu0
  %v3482 = vadd.f32 %v3462, %v3481
  %3483 = vdwg.mxu0
  %v3484 = vlaneseq
  %v3485 = vand.u32 %v3484, 127
  %vm3486 = vcmp.ge.s32.totalorder %v3485, 2
  %v3487 = vmax.f32 %v3482, 0.0
  %v3488 = vsel %vm3486, %v3487, %v3482
  %3489 = vst [vmem:[%s13] sm:$0xff] %v3488
  // Predicated region
  $region54: #{lstm_model_forward.1} parent=0 // pred_check
    _
  $region55: #{lstm_model_forward.1} parent=0 // pred_check_branch
    %3491 = sbr.rel (0) target = $region57
  $region56: #{lstm_model_forward.1} parent=0 // pred_region
    _
  $region57: #{lstm_model_forward.1} parent=0 // pred_fallthru
    _
  // Predicated region
  $region58: #{lstm_model_forward.1} parent=0 // pred_check
    _
  $region59: #{lstm_model_forward.1} parent=0 // pred_check_branch
    %3493 = sbr.rel (0) target = $region61
  $region60: #{lstm_model_forward.1} parent=0 // pred_region
    _
  $region61: #{lstm_model_forward.1} parent=0 // pred_fallthru
    _

</llo_original>
